<compile_context>
chip_gen: v7x
topology: tpu7x:2x2x1
jax: 0.10.0
libtpu: 0.0.40
codegen_flags: <defaults>
</compile_context>

<pallas_src>
import jax
import jax.numpy as jnp
from jax import lax
from jax.experimental import pallas as pl
from jax.experimental.pallas import tpu as pltpu
import numpy as np

_VMEM_SPEC = pl.BlockSpec(memory_space=pltpu.MemorySpace.VMEM)
_VMEM_LIMIT = 48 * 1024 * 1024     # explicit budget, below v7x's 64 MiB physical
_BATCH_PAD = 16                    # dense bf16 (16, 128) sublane/lane tiles


# -----------------------------------------------------------------------------
# Pallas kernels
# -----------------------------------------------------------------------------
def _lstm2_impl(x_ref, h0_ref, c0_ref,
                wih0_ref, whh0_ref, b0_ref,
                wih1_ref, whh1_ref, b1_ref,
                seq_ref, hn_ref, cn_ref, g_ref, *, write_l1_seq):
    """2-layer LSTM over a full time-major, batch-flattened sequence.

    x_ref   : (T*B, K)   bf16   rows ordered (t, b)  (time-major)
    h0/c0   : (2, B, K)  bf16 / f32 per-layer initial states
    wih/whh : (K, 4K)    bf16   pre-transposed weights (gate order i,f,g,o)
    b       : (1, 4K)    f32    b_ih + b_hh
    seq_ref : (T*B, K)   bf16   layer-0 outputs, later overwritten by layer 1
                                (decoder: this is the kernel output buffer)
    hn/cn   : (2, B, K)  bf16 / f32 final states
    g_ref   : (T*B, 4K)  f32    scratch: hoisted input->gate pre-activations
    """
    TB, K = x_ref.shape
    B = h0_ref.shape[1]
    T = TB // B

    def project(src_ref, wih_ref, b_ref):
        # One big MXU matmul for all timesteps; bias broadcast exactly once.
        g_ref[...] = (jnp.dot(src_ref[...], wih_ref[...],
                              preferred_element_type=jnp.float32)
                      + b_ref[...])

    def run_layer(whh_ref, h, c, out_ref):
        whh = whh_ref[...]
        # T is small and static: fully unroll the recurrence at trace time
        # (equivalent to lax.fori_loop(..., unroll=True)); all row slices
        # below are static, sublane-tile-aligned slices.
        for t in range(T):
            r0, r1 = t * B, (t + 1) * B
            gates = g_ref[r0:r1, :] + jnp.dot(
                h, whh, preferred_element_type=jnp.float32)
            i_g = jax.nn.sigmoid(gates[:, 0 * K:1 * K])
            f_g = jax.nn.sigmoid(gates[:, 1 * K:2 * K])
            g_g = jnp.tanh(gates[:, 2 * K:3 * K])
            o_g = jax.nn.sigmoid(gates[:, 3 * K:4 * K])
            c = f_g * c + i_g * g_g                        # cell state in f32
            h = (o_g * jnp.tanh(c)).astype(jnp.bfloat16)   # hidden in bf16
            if out_ref is not None:
                out_ref[r0:r1, :] = h
        return h, c

    # ---- layer 0: hoisted projection, then the recurrence ----
    project(x_ref, wih0_ref, b0_ref)
    h, c = run_layer(whh0_ref, h0_ref[0], c0_ref[0], seq_ref)
    hn_ref[0] = h
    cn_ref[0] = c

    # ---- layer 1: hoisted projection over the full layer-0 output slab ----
    project(seq_ref, wih1_ref, b1_ref)
    h, c = run_layer(whh1_ref, h0_ref[1], c0_ref[1],
                     seq_ref if write_l1_seq else None)
    hn_ref[1] = h
    cn_ref[1] = c


def lstm2_seq_kernel(x_ref, h0_ref, c0_ref,
                     wih0_ref, whh0_ref, b0_ref,
                     wih1_ref, whh1_ref, b1_ref,
                     out_ref, hn_ref, cn_ref, g_ref):
    """Decoder variant: emits the full top-layer output sequence.
    out_ref doubles as the layer-0 sequence slab (read-before-overwrite via
    the hoisted layer-1 projection)."""
    _lstm2_impl(x_ref, h0_ref, c0_ref, wih0_ref, whh0_ref, b0_ref,
                wih1_ref, whh1_ref, b1_ref, out_ref, hn_ref, cn_ref, g_ref,
                write_l1_seq=True)


def lstm2_final_kernel(x_ref, h0_ref, c0_ref,
                       wih0_ref, whh0_ref, b0_ref,
                       wih1_ref, whh1_ref, b1_ref,
                       hn_ref, cn_ref, seq_ref, g_ref):
    """Encoder variant: only final (h, c); no output-sequence HBM writeback."""
    _lstm2_impl(x_ref, h0_ref, c0_ref, wih0_ref, whh0_ref, b0_ref,
                wih1_ref, whh1_ref, b1_ref, seq_ref, hn_ref, cn_ref, g_ref,
                write_l1_seq=False)


def linear_kernel(x_ref, w_ref, b_ref, o_ref):
    """One (tm, tn) tile of out = x @ W^T + b (W pre-transposed to (K, E))."""
    o_ref[...] = (jnp.dot(x_ref[...], w_ref[...],
                          preferred_element_type=jnp.float32)
                  + b_ref[...]).astype(o_ref.dtype)


# -----------------------------------------------------------------------------
# Wrappers
# -----------------------------------------------------------------------------
def _round_up(n, m):
    return (n + m - 1) // m * m


def _lstm2_call(x2d, h0, c0, params, *, emit_sequence):
    """x2d: (T*Bp, K) bf16 time-major; h0 bf16 / c0 f32: (2, Bp, K)."""
    TB, K = x2d.shape
    Bp = h0.shape[1]
    cp = pltpu.CompilerParams(vmem_limit_bytes=_VMEM_LIMIT)
    g_scratch = pltpu.VMEM((TB, 4 * K), jnp.float32)
    if emit_sequence:
        out_shape = (jax.ShapeDtypeStruct((TB, K), jnp.bfloat16),
                     jax.ShapeDtypeStruct((2, Bp, K), jnp.bfloat16),
                     jax.ShapeDtypeStruct((2, Bp, K), jnp.float32))
        return pl.pallas_call(
            lstm2_seq_kernel,
            out_shape=out_shape,
            in_specs=[_VMEM_SPEC] * 9,
            out_specs=(_VMEM_SPEC,) * 3,
            scratch_shapes=[g_scratch],
            compiler_params=cp,
        )(x2d, h0, c0, *params)
    out_shape = (jax.ShapeDtypeStruct((2, Bp, K), jnp.bfloat16),
                 jax.ShapeDtypeStruct((2, Bp, K), jnp.float32))
    return pl.pallas_call(
        lstm2_final_kernel,
        out_shape=out_shape,
        in_specs=[_VMEM_SPEC] * 9,
        out_specs=(_VMEM_SPEC,) * 2,
        scratch_shapes=[pltpu.VMEM((TB, K), jnp.bfloat16), g_scratch],
        compiler_params=cp,
    )(x2d, h0, c0, *params)


def linear(x2d, w_t, b, *, tm=256, tn=512):
    """(N, K) bf16 @ (K, E) bf16 + (1, E) f32 -> (N, E) f32, gridded matmul."""
    N, K = x2d.shape
    E = w_t.shape[1]
    tm = min(tm, _round_up(N, 8))        # sublane-aligned row tile
    tn = min(tn, _round_up(E, 128))      # lane tile: multiple of 128
    Np, Ep = _round_up(N, tm), _round_up(E, tn)
    xp = jnp.pad(x2d, ((0, Np - N), (0, 0)))
    wp = jnp.pad(w_t, ((0, 0), (0, Ep - E)))
    bp = jnp.pad(b, ((0, 0), (0, Ep - E)))
    out = pl.pallas_call(
        linear_kernel,
        out_shape=jax.ShapeDtypeStruct((Np, Ep), jnp.float32),
        grid=(Np // tm, Ep // tn),
        in_specs=[pl.BlockSpec((tm, K), lambda i, j: (i, 0)),
                  pl.BlockSpec((K, tn), lambda i, j: (0, j)),
                  pl.BlockSpec((1, tn), lambda i, j: (0, j))],
        out_specs=pl.BlockSpec((tm, tn), lambda i, j: (i, j)),
        compiler_params=pltpu.CompilerParams(
            dimension_semantics=("parallel", "parallel"),
            vmem_limit_bytes=_VMEM_LIMIT),
    )(xp, wp, bp)
    return out[:N, :E]


def my_nmt_forward(params, jline, eline):
    """Pallas implementation of MyNMT.forward.
    jline: (B, Tj) int32, eline: (B, Te) int32 -> (B, Te, ev) float32."""
    B, Tj = jline.shape
    _, Te = eline.shape
    K = params["jemb"].shape[1]
    Bp = _round_up(B, _BATCH_PAD)

    # TODO(synk): embedding gather + batch pad stays in XLA; it could be folded
    # into a Pallas kernel with PrefetchScalarGridSpec row gathers.
    x_tm = params["jemb"][jline.T]                 # (Tj, B, K) bf16, time-major
    y_tm = params["eemb"][eline.T]                 # (Te, B, K) bf16
    if Bp != B:
        pad = ((0, 0), (0, Bp - B), (0, 0))
        x_tm = jnp.pad(x_tm, pad)
        y_tm = jnp.pad(y_tm, pad)
    x2d = x_tm.reshape(Tj * Bp, K)
    y2d = y_tm.reshape(Te * Bp, K)

    h0 = jnp.zeros((2, Bp, K), jnp.bfloat16)
    c0 = jnp.zeros((2, Bp, K), jnp.float32)

    # encoder: final states only (its output sequence is unused by the model)
    hnx, cnx = _lstm2_call(x2d, h0, c0, params["lstm1"], emit_sequence=False)

    # decoder seeded with the encoder final state
    oy2d, _hny, _cny = _lstm2_call(y2d, hnx, cnx, params["lstm2"],
                                   emit_sequence=True)

    oy = oy2d.reshape(Te, Bp, K).transpose(1, 0, 2)[:B]    # (B, Te, K) bf16
    out2d = linear(oy.reshape(B * Te, K), params["W_t"], params["Wb"])
    return out2d.reshape(B, Te, -1)


# -----------------------------------------------------------------------------
# Pure-JAX reference (same bf16/f32 numerics) for a correctness check
# -----------------------------------------------------------------------------
def _lstm_layer_ref(x_tm, h, c, wih, whh, b):
    def step(carry, x_t):
        h, c = carry
        gates = (jnp.dot(x_t, wih, preferred_element_type=jnp.float32)
                 + jnp.dot(h, whh, preferred_element_type=jnp.float32) + b)
        i, f, g, o = jnp.split(gates, 4, axis=-1)
        c = jax.nn.sigmoid(f) * c + jax.nn.sigmoid(i) * jnp.tanh(g)
        h = (jax.nn.sigmoid(o) * jnp.tanh(c)).astype(jnp.bfloat16)
        return (h, c), h
    (h, c), ys = lax.scan(step, (h, c), x_tm)
    return ys, h, c


def _lstm2_ref(x_tm, h0, c0, params):
    wih0, whh0, b0, wih1, whh1, b1 = params
    o0, h0f, c0f = _lstm_layer_ref(x_tm, h0[0], c0[0], wih0, whh0, b0)
    o1, h1f, c1f = _lstm_layer_ref(o0, h0[1], c0[1], wih1, whh1, b1)
    return o1, jnp.stack([h0f, h1f]), jnp.stack([c0f, c1f])


def my_nmt_ref(params, jline, eline):
    B = jline.shape[0]
    K = params["jemb"].shape[1]
    x_tm = params["jemb"][jline.T]
    y_tm = params["eemb"][eline.T]
    h0 = jnp.zeros((2, B, K), jnp.bfloat16)
    c0 = jnp.zeros((2, B, K), jnp.float32)
    _, hnx, cnx = _lstm2_ref(x_tm, h0, c0, params["lstm1"])
    oy_tm, _, _ = _lstm2_ref(y_tm, hnx, cnx, params["lstm2"])
    oy = jnp.swapaxes(oy_tm, 0, 1)                         # (B, Te, K) bf16
    return (jnp.dot(oy, params["W_t"], preferred_element_type=jnp.float32)
            + params["Wb"])


# -----------------------------------------------------------------------------
# Deterministic parameter construction (mirrors nn.Module shapes)
# -----------------------------------------------------------------------------
def init_params(key, jv, ev, k):
    keys = jax.random.split(key, 6)
    s = 1.0 / np.sqrt(k)

    def u(kk, shape):
        return jax.random.uniform(kk, shape, jnp.float32, -s, s)

    def lstm_params(kbase):
        ks = jax.random.split(kbase, 8)
        wih0 = u(ks[0], (4 * k, k)).T.astype(jnp.bfloat16)   # (k, 4k)
        whh0 = u(ks[1], (4 * k, k)).T.astype(jnp.bfloat16)
        b0 = (u(ks[2], (4 * k,)) + u(ks[3], (4 * k,))).reshape(1, 4 * k)  # f32
        wih1 = u(ks[4], (4 * k, k)).T.astype(jnp.bfloat16)
        whh1 = u(ks[5], (4 * k, k)).T.astype(jnp.bfloat16)
        b1 = (u(ks[6], (4 * k,)) + u(ks[7], (4 * k,))).reshape(1, 4 * k)
        return (wih0, whh0, b0, wih1, whh1, b1)

    return {
        "jemb": jax.random.normal(keys[0], (jv, k), jnp.float32).astype(jnp.bfloat16),
        "eemb": jax.random.normal(keys[1], (ev, k), jnp.float32).astype(jnp.bfloat16),
        "lstm1": lstm_params(keys[2]),
        "lstm2": lstm_params(keys[3]),
        "W_t": u(keys[4], (ev, k)).T.astype(jnp.bfloat16),   # (k, ev)
        "Wb": u(keys[5], (ev,)).reshape(1, ev),              # f32
    }


# -----------------------------------------------------------------------------
if __name__ == "__main__":
    B, Tj, Te, K = 2, 8, 8, 32
    JV, EV = 40, 50

    key = jax.random.PRNGKey(0)
    kp, kj, ke = jax.random.split(key, 3)
    params = init_params(kp, JV, EV, K)

    jline = jax.random.randint(kj, (B, Tj), 0, JV, dtype=jnp.int32)
    eline = jax.random.randint(ke, (B, Te), 0, EV, dtype=jnp.int32)

    out = jax.block_until_ready(my_nmt_forward(params, jline, eline))
    ref = jax.block_until_ready(my_nmt_ref(params, jline, eline))

    assert out.shape == (B, Te, EV), out.shape
    np.testing.assert_allclose(np.asarray(out, np.float32),
                               np.asarray(ref, np.float32),
                               rtol=1e-2, atol=1e-2)
    print("KERNEL_OK")
</pallas_src>

<mosaic_0001>
module attributes {stable_mosaic.version = 11 : i64} {
  func.func @lstm2_final_kernel(%arg0: memref<128x32xbf16, #tpu.memory_space<vmem>>, %arg1: memref<2x16x32xbf16, #tpu.memory_space<vmem>>, %arg2: memref<2x16x32xf32, #tpu.memory_space<vmem>>, %arg3: memref<32x128xbf16, #tpu.memory_space<vmem>>, %arg4: memref<32x128xbf16, #tpu.memory_space<vmem>>, %arg5: memref<1x128xf32, #tpu.memory_space<vmem>>, %arg6: memref<32x128xbf16, #tpu.memory_space<vmem>>, %arg7: memref<32x128xbf16, #tpu.memory_space<vmem>>, %arg8: memref<1x128xf32, #tpu.memory_space<vmem>>, %arg9: memref<2x16x32xbf16, #tpu.memory_space<vmem>>, %arg10: memref<2x16x32xf32, #tpu.memory_space<vmem>>, %arg11: memref<128x32xbf16, #tpu.memory_space<vmem>>, %arg12: memref<128x128xf32, #tpu.memory_space<vmem>>) attributes {dimension_semantics = [], scalar_prefetch = 0 : i64, scratch_operands = 2 : i64, tpu.core_type = #tpu.core_type<tc>} {
    %c0 = arith.constant 0 : index
    %c0_0 = arith.constant 0 : index
    %0 = vector.load %arg0[%c0, %c0_0] : memref<128x32xbf16, #tpu.memory_space<vmem>>, vector<128x32xbf16>
    %c0_1 = arith.constant 0 : index
    %c0_2 = arith.constant 0 : index
    %1 = vector.load %arg3[%c0_1, %c0_2] : memref<32x128xbf16, #tpu.memory_space<vmem>>, vector<32x128xbf16>
    %cst = arith.constant dense<0.000000e+00> : vector<128x128xf32>
    %2 = tpu.matmul %0, %1, %cst {dimension_numbers = #tpu.dot_dimension_numbers<[1], [0], [0], [1], [0, 0, 1, 1], [], []>} : vector<128x32xbf16>, vector<32x128xbf16>, vector<128x128xf32> -> vector<128x128xf32>
    %c0_3 = arith.constant 0 : index
    %c0_4 = arith.constant 0 : index
    %3 = vector.load %arg5[%c0_3, %c0_4] : memref<1x128xf32, #tpu.memory_space<vmem>>, vector<1x128xf32>
    %4 = vector.broadcast %3 : vector<1x128xf32> to vector<128x128xf32>
    %5 = arith.addf %2, %4 : vector<128x128xf32>
    %c0_5 = arith.constant 0 : index
    %c0_6 = arith.constant 0 : index
    %6 = vector.load %arg12[%c0_5, %c0_6] : memref<128x128xf32, #tpu.memory_space<vmem>>, vector<128x128xf32>
    tpu.vector_store %arg12[%c0_5, %c0_6], %5 {strides = array<i32>} : memref<128x128xf32, #tpu.memory_space<vmem>>, vector<128x128xf32>,
    %c0_7 = arith.constant 0 : index
    %c0_8 = arith.constant 0 : index
    %c0_9 = arith.constant 0 : index
    %7 = vector.load %arg1[%c0_7, %c0_8, %c0_9] : memref<2x16x32xbf16, #tpu.memory_space<vmem>>, vector<1x16x32xbf16>
    %8 = vector.shape_cast %7 : vector<1x16x32xbf16> to vector<16x32xbf16>
    %c0_10 = arith.constant 0 : index
    %c0_11 = arith.constant 0 : index
    %c0_12 = arith.constant 0 : index
    %9 = vector.load %arg2[%c0_10, %c0_11, %c0_12] : memref<2x16x32xf32, #tpu.memory_space<vmem>>, vector<1x16x32xf32>
    %10 = vector.shape_cast %9 : vector<1x16x32xf32> to vector<16x32xf32>
    %c0_13 = arith.constant 0 : index
    %c0_14 = arith.constant 0 : index
    %11 = vector.load %arg4[%c0_13, %c0_14] : memref<32x128xbf16, #tpu.memory_space<vmem>>, vector<32x128xbf16>
    %c0_15 = arith.constant 0 : index
    %c0_16 = arith.constant 0 : index
    %12 = vector.load %arg12[%c0_15, %c0_16] : memref<128x128xf32, #tpu.memory_space<vmem>>, vector<16x128xf32>
    %cst_17 = arith.constant dense<0.000000e+00> : vector<16x128xf32>
    %13 = tpu.matmul %8, %11, %cst_17 {dimension_numbers = #tpu.dot_dimension_numbers<[1], [0], [0], [1], [0, 0, 1, 1], [], []>} : vector<16x32xbf16>, vector<32x128xbf16>, vector<16x128xf32> -> vector<16x128xf32>
    %14 = arith.addf %12, %13 : vector<16x128xf32>
    %15 = vector.extract_strided_slice %14 {offsets = [0, 0], sizes = [16, 32], strides = [1, 1]} : vector<16x128xf32> to vector<16x32xf32>
    %16 = arith.negf %15 : vector<16x32xf32>
    %17 = math.exp %16 : vector<16x32xf32>
    %cst_18 = arith.constant 1.000000e+00 : f32
    %18 = vector.broadcast %cst_18 : f32 to vector<16x32xf32>
    %19 = arith.addf %18, %17 : vector<16x32xf32>
    %20 = arith.divf %18, %19 : vector<16x32xf32>
    %21 = vector.extract_strided_slice %14 {offsets = [0, 32], sizes = [16, 32], strides = [1, 1]} : vector<16x128xf32> to vector<16x32xf32>
    %22 = arith.negf %21 : vector<16x32xf32>
    %23 = math.exp %22 : vector<16x32xf32>
    %cst_19 = arith.constant 1.000000e+00 : f32
    %24 = vector.broadcast %cst_19 : f32 to vector<16x32xf32>
    %25 = arith.addf %24, %23 : vector<16x32xf32>
    %26 = arith.divf %24, %25 : vector<16x32xf32>
    %27 = vector.extract_strided_slice %14 {offsets = [0, 64], sizes = [16, 32], strides = [1, 1]} : vector<16x128xf32> to vector<16x32xf32>
    %28 = math.tanh %27 : vector<16x32xf32>
    %29 = vector.extract_strided_slice %14 {offsets = [0, 96], sizes = [16, 32], strides = [1, 1]} : vector<16x128xf32> to vector<16x32xf32>
    %30 = arith.negf %29 : vector<16x32xf32>
    %31 = math.exp %30 : vector<16x32xf32>
    %cst_20 = arith.constant 1.000000e+00 : f32
    %32 = vector.broadcast %cst_20 : f32 to vector<16x32xf32>
    %33 = arith.addf %32, %31 : vector<16x32xf32>
    %34 = arith.divf %32, %33 : vector<16x32xf32>
    %35 = arith.mulf %26, %10 : vector<16x32xf32>
    %36 = arith.mulf %20, %28 : vector<16x32xf32>
    %37 = arith.addf %35, %36 : vector<16x32xf32>
    %38 = math.tanh %37 : vector<16x32xf32>
    %39 = arith.mulf %34, %38 : vector<16x32xf32>
    %40 = arith.truncf %39 : vector<16x32xf32> to vector<16x32xbf16>
    %c0_21 = arith.constant 0 : index
    %c0_22 = arith.constant 0 : index
    %41 = vector.load %arg11[%c0_21, %c0_22] : memref<128x32xbf16, #tpu.memory_space<vmem>>, vector<16x32xbf16>
    tpu.vector_store %arg11[%c0_21, %c0_22], %40 {strides = array<i32>} : memref<128x32xbf16, #tpu.memory_space<vmem>>, vector<16x32xbf16>,
    %c16 = arith.constant 16 : index
    %c0_23 = arith.constant 0 : index
    %42 = vector.load %arg12[%c16, %c0_23] : memref<128x128xf32, #tpu.memory_space<vmem>>, vector<16x128xf32>
    %cst_24 = arith.constant dense<0.000000e+00> : vector<16x128xf32>
    %43 = tpu.matmul %40, %11, %cst_24 {dimension_numbers = #tpu.dot_dimension_numbers<[1], [0], [0], [1], [0, 0, 1, 1], [], []>} : vector<16x32xbf16>, vector<32x128xbf16>, vector<16x128xf32> -> vector<16x128xf32>
    %44 = arith.addf %42, %43 : vector<16x128xf32>
    %45 = vector.extract_strided_slice %44 {offsets = [0, 0], sizes = [16, 32], strides = [1, 1]} : vector<16x128xf32> to vector<16x32xf32>
    %46 = arith.negf %45 : vector<16x32xf32>
    %47 = math.exp %46 : vector<16x32xf32>
    %cst_25 = arith.constant 1.000000e+00 : f32
    %48 = vector.broadcast %cst_25 : f32 to vector<16x32xf32>
    %49 = arith.addf %48, %47 : vector<16x32xf32>
    %50 = arith.divf %48, %49 : vector<16x32xf32>
    %51 = vector.extract_strided_slice %44 {offsets = [0, 32], sizes = [16, 32], strides = [1, 1]} : vector<16x128xf32> to vector<16x32xf32>
    %52 = arith.negf %51 : vector<16x32xf32>
    %53 = math.exp %52 : vector<16x32xf32>
    %cst_26 = arith.constant 1.000000e+00 : f32
    %54 = vector.broadcast %cst_26 : f32 to vector<16x32xf32>
    %55 = arith.addf %54, %53 : vector<16x32xf32>
    %56 = arith.divf %54, %55 : vector<16x32xf32>
    %57 = vector.extract_strided_slice %44 {offsets = [0, 64], sizes = [16, 32], strides = [1, 1]} : vector<16x128xf32> to vector<16x32xf32>
    %58 = math.tanh %57 : vector<16x32xf32>
    %59 = vector.extract_strided_slice %44 {offsets = [0, 96], sizes = [16, 32], strides = [1, 1]} : vector<16x128xf32> to vector<16x32xf32>
    %60 = arith.negf %59 : vector<16x32xf32>
    %61 = math.exp %60 : vector<16x32xf32>
    %cst_27 = arith.constant 1.000000e+00 : f32
    %62 = vector.broadcast %cst_27 : f32 to vector<16x32xf32>
    %63 = arith.addf %62, %61 : vector<16x32xf32>
    %64 = arith.divf %62, %63 : vector<16x32xf32>
    %65 = arith.mulf %56, %37 : vector<16x32xf32>
    %66 = arith.mulf %50, %58 : vector<16x32xf32>
    %67 = arith.addf %65, %66 : vector<16x32xf32>
    %68 = math.tanh %67 : vector<16x32xf32>
    %69 = arith.mulf %64, %68 : vector<16x32xf32>
    %70 = arith.truncf %69 : vector<16x32xf32> to vector<16x32xbf16>
    %c16_28 = arith.constant 16 : index
    %c0_29 = arith.constant 0 : index
    %71 = vector.load %arg11[%c16_28, %c0_29] : memref<128x32xbf16, #tpu.memory_space<vmem>>, vector<16x32xbf16>
    tpu.vector_store %arg11[%c16_28, %c0_29], %70 {strides = array<i32>} : memref<128x32xbf16, #tpu.memory_space<vmem>>, vector<16x32xbf16>,
    %c32 = arith.constant 32 : index
    %c0_30 = arith.constant 0 : index
    %72 = vector.load %arg12[%c32, %c0_30] : memref<128x128xf32, #tpu.memory_space<vmem>>, vector<16x128xf32>
    %cst_31 = arith.constant dense<0.000000e+00> : vector<16x128xf32>
    %73 = tpu.matmul %70, %11, %cst_31 {dimension_numbers = #tpu.dot_dimension_numbers<[1], [0], [0], [1], [0, 0, 1, 1], [], []>} : vector<16x32xbf16>, vector<32x128xbf16>, vector<16x128xf32> -> vector<16x128xf32>
    %74 = arith.addf %72, %73 : vector<16x128xf32>
    %75 = vector.extract_strided_slice %74 {offsets = [0, 0], sizes = [16, 32], strides = [1, 1]} : vector<16x128xf32> to vector<16x32xf32>
    %76 = arith.negf %75 : vector<16x32xf32>
    %77 = math.exp %76 : vector<16x32xf32>
    %cst_32 = arith.constant 1.000000e+00 : f32
    %78 = vector.broadcast %cst_32 : f32 to vector<16x32xf32>
    %79 = arith.addf %78, %77 : vector<16x32xf32>
    %80 = arith.divf %78, %79 : vector<16x32xf32>
    %81 = vector.extract_strided_slice %74 {offsets = [0, 32], sizes = [16, 32], strides = [1, 1]} : vector<16x128xf32> to vector<16x32xf32>
    %82 = arith.negf %81 : vector<16x32xf32>
    %83 = math.exp %82 : vector<16x32xf32>
    %cst_33 = arith.constant 1.000000e+00 : f32
    %84 = vector.broadcast %cst_33 : f32 to vector<16x32xf32>
    %85 = arith.addf %84, %83 : vector<16x32xf32>
    %86 = arith.divf %84, %85 : vector<16x32xf32>
    %87 = vector.extract_strided_slice %74 {offsets = [0, 64], sizes = [16, 32], strides = [1, 1]} : vector<16x128xf32> to vector<16x32xf32>
    %88 = math.tanh %87 : vector<16x32xf32>
    %89 = vector.extract_strided_slice %74 {offsets = [0, 96], sizes = [16, 32], strides = [1, 1]} : vector<16x128xf32> to vector<16x32xf32>
    %90 = arith.negf %89 : vector<16x32xf32>
    %91 = math.exp %90 : vector<16x32xf32>
    %cst_34 = arith.constant 1.000000e+00 : f32
    %92 = vector.broadcast %cst_34 : f32 to vector<16x32xf32>
    %93 = arith.addf %92, %91 : vector<16x32xf32>
    %94 = arith.divf %92, %93 : vector<16x32xf32>
    %95 = arith.mulf %86, %67 : vector<16x32xf32>
    %96 = arith.mulf %80, %88 : vector<16x32xf32>
    %97 = arith.addf %95, %96 : vector<16x32xf32>
    %98 = math.tanh %97 : vector<16x32xf32>
    %99 = arith.mulf %94, %98 : vector<16x32xf32>
    %100 = arith.truncf %99 : vector<16x32xf32> to vector<16x32xbf16>
    %c32_35 = arith.constant 32 : index
    %c0_36 = arith.constant 0 : index
    %101 = vector.load %arg11[%c32_35, %c0_36] : memref<128x32xbf16, #tpu.memory_space<vmem>>, vector<16x32xbf16>
    tpu.vector_store %arg11[%c32_35, %c0_36], %100 {strides = array<i32>} : memref<128x32xbf16, #tpu.memory_space<vmem>>, vector<16x32xbf16>,
    %c48 = arith.constant 48 : index
    %c0_37 = arith.constant 0 : index
    %102 = vector.load %arg12[%c48, %c0_37] : memref<128x128xf32, #tpu.memory_space<vmem>>, vector<16x128xf32>
    %cst_38 = arith.constant dense<0.000000e+00> : vector<16x128xf32>
    %103 = tpu.matmul %100, %11, %cst_38 {dimension_numbers = #tpu.dot_dimension_numbers<[1], [0], [0], [1], [0, 0, 1, 1], [], []>} : vector<16x32xbf16>, vector<32x128xbf16>, vector<16x128xf32> -> vector<16x128xf32>
    %104 = arith.addf %102, %103 : vector<16x128xf32>
    %105 = vector.extract_strided_slice %104 {offsets = [0, 0], sizes = [16, 32], strides = [1, 1]} : vector<16x128xf32> to vector<16x32xf32>
    %106 = arith.negf %105 : vector<16x32xf32>
    %107 = math.exp %106 : vector<16x32xf32>
    %cst_39 = arith.constant 1.000000e+00 : f32
    %108 = vector.broadcast %cst_39 : f32 to vector<16x32xf32>
    %109 = arith.addf %108, %107 : vector<16x32xf32>
    %110 = arith.divf %108, %109 : vector<16x32xf32>
    %111 = vector.extract_strided_slice %104 {offsets = [0, 32], sizes = [16, 32], strides = [1, 1]} : vector<16x128xf32> to vector<16x32xf32>
    %112 = arith.negf %111 : vector<16x32xf32>
    %113 = math.exp %112 : vector<16x32xf32>
    %cst_40 = arith.constant 1.000000e+00 : f32
    %114 = vector.broadcast %cst_40 : f32 to vector<16x32xf32>
    %115 = arith.addf %114, %113 : vector<16x32xf32>
    %116 = arith.divf %114, %115 : vector<16x32xf32>
    %117 = vector.extract_strided_slice %104 {offsets = [0, 64], sizes = [16, 32], strides = [1, 1]} : vector<16x128xf32> to vector<16x32xf32>
    %118 = math.tanh %117 : vector<16x32xf32>
    %119 = vector.extract_strided_slice %104 {offsets = [0, 96], sizes = [16, 32], strides = [1, 1]} : vector<16x128xf32> to vector<16x32xf32>
    %120 = arith.negf %119 : vector<16x32xf32>
    %121 = math.exp %120 : vector<16x32xf32>
    %cst_41 = arith.constant 1.000000e+00 : f32
    %122 = vector.broadcast %cst_41 : f32 to vector<16x32xf32>
    %123 = arith.addf %122, %121 : vector<16x32xf32>
    %124 = arith.divf %122, %123 : vector<16x32xf32>
    %125 = arith.mulf %116, %97 : vector<16x32xf32>
    %126 = arith.mulf %110, %118 : vector<16x32xf32>
    %127 = arith.addf %125, %126 : vector<16x32xf32>
    %128 = math.tanh %127 : vector<16x32xf32>
    %129 = arith.mulf %124, %128 : vector<16x32xf32>
    %130 = arith.truncf %129 : vector<16x32xf32> to vector<16x32xbf16>
    %c48_42 = arith.constant 48 : index
    %c0_43 = arith.constant 0 : index
    %131 = vector.load %arg11[%c48_42, %c0_43] : memref<128x32xbf16, #tpu.memory_space<vmem>>, vector<16x32xbf16>
    tpu.vector_store %arg11[%c48_42, %c0_43], %130 {strides = array<i32>} : memref<128x32xbf16, #tpu.memory_space<vmem>>, vector<16x32xbf16>,
    %c64 = arith.constant 64 : index
    %c0_44 = arith.constant 0 : index
    %132 = vector.load %arg12[%c64, %c0_44] : memref<128x128xf32, #tpu.memory_space<vmem>>, vector<16x128xf32>
    %cst_45 = arith.constant dense<0.000000e+00> : vector<16x128xf32>
    %133 = tpu.matmul %130, %11, %cst_45 {dimension_numbers = #tpu.dot_dimension_numbers<[1], [0], [0], [1], [0, 0, 1, 1], [], []>} : vector<16x32xbf16>, vector<32x128xbf16>, vector<16x128xf32> -> vector<16x128xf32>
    %134 = arith.addf %132, %133 : vector<16x128xf32>
    %135 = vector.extract_strided_slice %134 {offsets = [0, 0], sizes = [16, 32], strides = [1, 1]} : vector<16x128xf32> to vector<16x32xf32>
    %136 = arith.negf %135 : vector<16x32xf32>
    %137 = math.exp %136 : vector<16x32xf32>
    %cst_46 = arith.constant 1.000000e+00 : f32
    %138 = vector.broadcast %cst_46 : f32 to vector<16x32xf32>
    %139 = arith.addf %138, %137 : vector<16x32xf32>
    %140 = arith.divf %138, %139 : vector<16x32xf32>
    %141 = vector.extract_strided_slice %134 {offsets = [0, 32], sizes = [16, 32], strides = [1, 1]} : vector<16x128xf32> to vector<16x32xf32>
    %142 = arith.negf %141 : vector<16x32xf32>
    %143 = math.exp %142 : vector<16x32xf32>
    %cst_47 = arith.constant 1.000000e+00 : f32
    %144 = vector.broadcast %cst_47 : f32 to vector<16x32xf32>
    %145 = arith.addf %144, %143 : vector<16x32xf32>
    %146 = arith.divf %144, %145 : vector<16x32xf32>
    %147 = vector.extract_strided_slice %134 {offsets = [0, 64], sizes = [16, 32], strides = [1, 1]} : vector<16x128xf32> to vector<16x32xf32>
    %148 = math.tanh %147 : vector<16x32xf32>
    %149 = vector.extract_strided_slice %134 {offsets = [0, 96], sizes = [16, 32], strides = [1, 1]} : vector<16x128xf32> to vector<16x32xf32>
    %150 = arith.negf %149 : vector<16x32xf32>
    %151 = math.exp %150 : vector<16x32xf32>
    %cst_48 = arith.constant 1.000000e+00 : f32
    %152 = vector.broadcast %cst_48 : f32 to vector<16x32xf32>
    %153 = arith.addf %152, %151 : vector<16x32xf32>
    %154 = arith.divf %152, %153 : vector<16x32xf32>
    %155 = arith.mulf %146, %127 : vector<16x32xf32>
    %156 = arith.mulf %140, %148 : vector<16x32xf32>
    %157 = arith.addf %155, %156 : vector<16x32xf32>
    %158 = math.tanh %157 : vector<16x32xf32>
    %159 = arith.mulf %154, %158 : vector<16x32xf32>
    %160 = arith.truncf %159 : vector<16x32xf32> to vector<16x32xbf16>
    %c64_49 = arith.constant 64 : index
    %c0_50 = arith.constant 0 : index
    %161 = vector.load %arg11[%c64_49, %c0_50] : memref<128x32xbf16, #tpu.memory_space<vmem>>, vector<16x32xbf16>
    tpu.vector_store %arg11[%c64_49, %c0_50], %160 {strides = array<i32>} : memref<128x32xbf16, #tpu.memory_space<vmem>>, vector<16x32xbf16>,
    %c80 = arith.constant 80 : index
    %c0_51 = arith.constant 0 : index
    %162 = vector.load %arg12[%c80, %c0_51] : memref<128x128xf32, #tpu.memory_space<vmem>>, vector<16x128xf32>
    %cst_52 = arith.constant dense<0.000000e+00> : vector<16x128xf32>
    %163 = tpu.matmul %160, %11, %cst_52 {dimension_numbers = #tpu.dot_dimension_numbers<[1], [0], [0], [1], [0, 0, 1, 1], [], []>} : vector<16x32xbf16>, vector<32x128xbf16>, vector<16x128xf32> -> vector<16x128xf32>
    %164 = arith.addf %162, %163 : vector<16x128xf32>
    %165 = vector.extract_strided_slice %164 {offsets = [0, 0], sizes = [16, 32], strides = [1, 1]} : vector<16x128xf32> to vector<16x32xf32>
    %166 = arith.negf %165 : vector<16x32xf32>
    %167 = math.exp %166 : vector<16x32xf32>
    %cst_53 = arith.constant 1.000000e+00 : f32
    %168 = vector.broadcast %cst_53 : f32 to vector<16x32xf32>
    %169 = arith.addf %168, %167 : vector<16x32xf32>
    %170 = arith.divf %168, %169 : vector<16x32xf32>
    %171 = vector.extract_strided_slice %164 {offsets = [0, 32], sizes = [16, 32], strides = [1, 1]} : vector<16x128xf32> to vector<16x32xf32>
    %172 = arith.negf %171 : vector<16x32xf32>
    %173 = math.exp %172 : vector<16x32xf32>
    %cst_54 = arith.constant 1.000000e+00 : f32
    %174 = vector.broadcast %cst_54 : f32 to vector<16x32xf32>
    %175 = arith.addf %174, %173 : vector<16x32xf32>
    %176 = arith.divf %174, %175 : vector<16x32xf32>
    %177 = vector.extract_strided_slice %164 {offsets = [0, 64], sizes = [16, 32], strides = [1, 1]} : vector<16x128xf32> to vector<16x32xf32>
    %178 = math.tanh %177 : vector<16x32xf32>
    %179 = vector.extract_strided_slice %164 {offsets = [0, 96], sizes = [16, 32], strides = [1, 1]} : vector<16x128xf32> to vector<16x32xf32>
    %180 = arith.negf %179 : vector<16x32xf32>
    %181 = math.exp %180 : vector<16x32xf32>
    %cst_55 = arith.constant 1.000000e+00 : f32
    %182 = vector.broadcast %cst_55 : f32 to vector<16x32xf32>
    %183 = arith.addf %182, %181 : vector<16x32xf32>
    %184 = arith.divf %182, %183 : vector<16x32xf32>
    %185 = arith.mulf %176, %157 : vector<16x32xf32>
    %186 = arith.mulf %170, %178 : vector<16x32xf32>
    %187 = arith.addf %185, %186 : vector<16x32xf32>
    %188 = math.tanh %187 : vector<16x32xf32>
    %189 = arith.mulf %184, %188 : vector<16x32xf32>
    %190 = arith.truncf %189 : vector<16x32xf32> to vector<16x32xbf16>
    %c80_56 = arith.constant 80 : index
    %c0_57 = arith.constant 0 : index
    %191 = vector.load %arg11[%c80_56, %c0_57] : memref<128x32xbf16, #tpu.memory_space<vmem>>, vector<16x32xbf16>
    tpu.vector_store %arg11[%c80_56, %c0_57], %190 {strides = array<i32>} : memref<128x32xbf16, #tpu.memory_space<vmem>>, vector<16x32xbf16>,
    %c96 = arith.constant 96 : index
    %c0_58 = arith.constant 0 : index
    %192 = vector.load %arg12[%c96, %c0_58] : memref<128x128xf32, #tpu.memory_space<vmem>>, vector<16x128xf32>
    %cst_59 = arith.constant dense<0.000000e+00> : vector<16x128xf32>
    %193 = tpu.matmul %190, %11, %cst_59 {dimension_numbers = #tpu.dot_dimension_numbers<[1], [0], [0], [1], [0, 0, 1, 1], [], []>} : vector<16x32xbf16>, vector<32x128xbf16>, vector<16x128xf32> -> vector<16x128xf32>
    %194 = arith.addf %192, %193 : vector<16x128xf32>
    %195 = vector.extract_strided_slice %194 {offsets = [0, 0], sizes = [16, 32], strides = [1, 1]} : vector<16x128xf32> to vector<16x32xf32>
    %196 = arith.negf %195 : vector<16x32xf32>
    %197 = math.exp %196 : vector<16x32xf32>
    %cst_60 = arith.constant 1.000000e+00 : f32
    %198 = vector.broadcast %cst_60 : f32 to vector<16x32xf32>
    %199 = arith.addf %198, %197 : vector<16x32xf32>
    %200 = arith.divf %198, %199 : vector<16x32xf32>
    %201 = vector.extract_strided_slice %194 {offsets = [0, 32], sizes = [16, 32], strides = [1, 1]} : vector<16x128xf32> to vector<16x32xf32>
    %202 = arith.negf %201 : vector<16x32xf32>
    %203 = math.exp %202 : vector<16x32xf32>
    %cst_61 = arith.constant 1.000000e+00 : f32
    %204 = vector.broadcast %cst_61 : f32 to vector<16x32xf32>
    %205 = arith.addf %204, %203 : vector<16x32xf32>
    %206 = arith.divf %204, %205 : vector<16x32xf32>
    %207 = vector.extract_strided_slice %194 {offsets = [0, 64], sizes = [16, 32], strides = [1, 1]} : vector<16x128xf32> to vector<16x32xf32>
    %208 = math.tanh %207 : vector<16x32xf32>
    %209 = vector.extract_strided_slice %194 {offsets = [0, 96], sizes = [16, 32], strides = [1, 1]} : vector<16x128xf32> to vector<16x32xf32>
    %210 = arith.negf %209 : vector<16x32xf32>
    %211 = math.exp %210 : vector<16x32xf32>
    %cst_62 = arith.constant 1.000000e+00 : f32
    %212 = vector.broadcast %cst_62 : f32 to vector<16x32xf32>
    %213 = arith.addf %212, %211 : vector<16x32xf32>
    %214 = arith.divf %212, %213 : vector<16x32xf32>
    %215 = arith.mulf %206, %187 : vector<16x32xf32>
    %216 = arith.mulf %200, %208 : vector<16x32xf32>
    %217 = arith.addf %215, %216 : vector<16x32xf32>
    %218 = math.tanh %217 : vector<16x32xf32>
    %219 = arith.mulf %214, %218 : vector<16x32xf32>
    %220 = arith.truncf %219 : vector<16x32xf32> to vector<16x32xbf16>
    %c96_63 = arith.constant 96 : index
    %c0_64 = arith.constant 0 : index
    %221 = vector.load %arg11[%c96_63, %c0_64] : memref<128x32xbf16, #tpu.memory_space<vmem>>, vector<16x32xbf16>
    tpu.vector_store %arg11[%c96_63, %c0_64], %220 {strides = array<i32>} : memref<128x32xbf16, #tpu.memory_space<vmem>>, vector<16x32xbf16>,
    %c112 = arith.constant 112 : index
    %c0_65 = arith.constant 0 : index
    %222 = vector.load %arg12[%c112, %c0_65] : memref<128x128xf32, #tpu.memory_space<vmem>>, vector<16x128xf32>
    %cst_66 = arith.constant dense<0.000000e+00> : vector<16x128xf32>
    %223 = tpu.matmul %220, %11, %cst_66 {dimension_numbers = #tpu.dot_dimension_numbers<[1], [0], [0], [1], [0, 0, 1, 1], [], []>} : vector<16x32xbf16>, vector<32x128xbf16>, vector<16x128xf32> -> vector<16x128xf32>
    %224 = arith.addf %222, %223 : vector<16x128xf32>
    %225 = vector.extract_strided_slice %224 {offsets = [0, 0], sizes = [16, 32], strides = [1, 1]} : vector<16x128xf32> to vector<16x32xf32>
    %226 = arith.negf %225 : vector<16x32xf32>
    %227 = math.exp %226 : vector<16x32xf32>
    %cst_67 = arith.constant 1.000000e+00 : f32
    %228 = vector.broadcast %cst_67 : f32 to vector<16x32xf32>
    %229 = arith.addf %228, %227 : vector<16x32xf32>
    %230 = arith.divf %228, %229 : vector<16x32xf32>
    %231 = vector.extract_strided_slice %224 {offsets = [0, 32], sizes = [16, 32], strides = [1, 1]} : vector<16x128xf32> to vector<16x32xf32>
    %232 = arith.negf %231 : vector<16x32xf32>
    %233 = math.exp %232 : vector<16x32xf32>
    %cst_68 = arith.constant 1.000000e+00 : f32
    %234 = vector.broadcast %cst_68 : f32 to vector<16x32xf32>
    %235 = arith.addf %234, %233 : vector<16x32xf32>
    %236 = arith.divf %234, %235 : vector<16x32xf32>
    %237 = vector.extract_strided_slice %224 {offsets = [0, 64], sizes = [16, 32], strides = [1, 1]} : vector<16x128xf32> to vector<16x32xf32>
    %238 = math.tanh %237 : vector<16x32xf32>
    %239 = vector.extract_strided_slice %224 {offsets = [0, 96], sizes = [16, 32], strides = [1, 1]} : vector<16x128xf32> to vector<16x32xf32>
    %240 = arith.negf %239 : vector<16x32xf32>
    %241 = math.exp %240 : vector<16x32xf32>
    %cst_69 = arith.constant 1.000000e+00 : f32
    %242 = vector.broadcast %cst_69 : f32 to vector<16x32xf32>
    %243 = arith.addf %242, %241 : vector<16x32xf32>
    %244 = arith.divf %242, %243 : vector<16x32xf32>
    %245 = arith.mulf %236, %217 : vector<16x32xf32>
    %246 = arith.mulf %230, %238 : vector<16x32xf32>
    %247 = arith.addf %245, %246 : vector<16x32xf32>
    %248 = math.tanh %247 : vector<16x32xf32>
    %249 = arith.mulf %244, %248 : vector<16x32xf32>
    %250 = arith.truncf %249 : vector<16x32xf32> to vector<16x32xbf16>
    %c112_70 = arith.constant 112 : index
    %c0_71 = arith.constant 0 : index
    %251 = vector.load %arg11[%c112_70, %c0_71] : memref<128x32xbf16, #tpu.memory_space<vmem>>, vector<16x32xbf16>
    tpu.vector_store %arg11[%c112_70, %c0_71], %250 {strides = array<i32>} : memref<128x32xbf16, #tpu.memory_space<vmem>>, vector<16x32xbf16>,
    %c0_72 = arith.constant 0 : index
    %c0_73 = arith.constant 0 : index
    %c0_74 = arith.constant 0 : index
    %252 = vector.load %arg9[%c0_72, %c0_73, %c0_74] : memref<2x16x32xbf16, #tpu.memory_space<vmem>>, vector<1x16x32xbf16>
    %253 = vector.shape_cast %252 : vector<1x16x32xbf16> to vector<16x32xbf16>
    %254 = vector.shape_cast %250 : vector<16x32xbf16> to vector<1x16x32xbf16>
    tpu.vector_store %arg9[%c0_72, %c0_73, %c0_74], %254 {strides = array<i32>} : memref<2x16x32xbf16, #tpu.memory_space<vmem>>, vector<1x16x32xbf16>,
    %c0_75 = arith.constant 0 : index
    %c0_76 = arith.constant 0 : index
    %c0_77 = arith.constant 0 : index
    %255 = vector.load %arg10[%c0_75, %c0_76, %c0_77] : memref<2x16x32xf32, #tpu.memory_space<vmem>>, vector<1x16x32xf32>
    %256 = vector.shape_cast %255 : vector<1x16x32xf32> to vector<16x32xf32>
    %257 = vector.shape_cast %247 : vector<16x32xf32> to vector<1x16x32xf32>
    tpu.vector_store %arg10[%c0_75, %c0_76, %c0_77], %257 {strides = array<i32>} : memref<2x16x32xf32, #tpu.memory_space<vmem>>, vector<1x16x32xf32>,
    %c0_78 = arith.constant 0 : index
    %c0_79 = arith.constant 0 : index
    %258 = vector.load %arg11[%c0_78, %c0_79] : memref<128x32xbf16, #tpu.memory_space<vmem>>, vector<128x32xbf16>
    %c0_80 = arith.constant 0 : index
    %c0_81 = arith.constant 0 : index
    %259 = vector.load %arg6[%c0_80, %c0_81] : memref<32x128xbf16, #tpu.memory_space<vmem>>, vector<32x128xbf16>
    %cst_82 = arith.constant dense<0.000000e+00> : vector<128x128xf32>
    %260 = tpu.matmul %258, %259, %cst_82 {dimension_numbers = #tpu.dot_dimension_numbers<[1], [0], [0], [1], [0, 0, 1, 1], [], []>} : vector<128x32xbf16>, vector<32x128xbf16>, vector<128x128xf32> -> vector<128x128xf32>
    %c0_83 = arith.constant 0 : index
    %c0_84 = arith.constant 0 : index
    %261 = vector.load %arg8[%c0_83, %c0_84] : memref<1x128xf32, #tpu.memory_space<vmem>>, vector<1x128xf32>
    %262 = vector.broadcast %261 : vector<1x128xf32> to vector<128x128xf32>
    %263 = arith.addf %260, %262 : vector<128x128xf32>
    %c0_85 = arith.constant 0 : index
    %c0_86 = arith.constant 0 : index
    %264 = vector.load %arg12[%c0_85, %c0_86] : memref<128x128xf32, #tpu.memory_space<vmem>>, vector<128x128xf32>
    tpu.vector_store %arg12[%c0_85, %c0_86], %263 {strides = array<i32>} : memref<128x128xf32, #tpu.memory_space<vmem>>, vector<128x128xf32>,
    %c1 = arith.constant 1 : index
    %c0_87 = arith.constant 0 : index
    %c0_88 = arith.constant 0 : index
    %265 = vector.load %arg1[%c1, %c0_87, %c0_88] : memref<2x16x32xbf16, #tpu.memory_space<vmem>>, vector<1x16x32xbf16>
    %266 = vector.shape_cast %265 : vector<1x16x32xbf16> to vector<16x32xbf16>
    %c1_89 = arith.constant 1 : index
    %c0_90 = arith.constant 0 : index
    %c0_91 = arith.constant 0 : index
    %267 = vector.load %arg2[%c1_89, %c0_90, %c0_91] : memref<2x16x32xf32, #tpu.memory_space<vmem>>, vector<1x16x32xf32>
    %268 = vector.shape_cast %267 : vector<1x16x32xf32> to vector<16x32xf32>
    %c0_92 = arith.constant 0 : index
    %c0_93 = arith.constant 0 : index
    %269 = vector.load %arg7[%c0_92, %c0_93] : memref<32x128xbf16, #tpu.memory_space<vmem>>, vector<32x128xbf16>
    %c0_94 = arith.constant 0 : index
    %c0_95 = arith.constant 0 : index
    %270 = vector.load %arg12[%c0_94, %c0_95] : memref<128x128xf32, #tpu.memory_space<vmem>>, vector<16x128xf32>
    %cst_96 = arith.constant dense<0.000000e+00> : vector<16x128xf32>
    %271 = tpu.matmul %266, %269, %cst_96 {dimension_numbers = #tpu.dot_dimension_numbers<[1], [0], [0], [1], [0, 0, 1, 1], [], []>} : vector<16x32xbf16>, vector<32x128xbf16>, vector<16x128xf32> -> vector<16x128xf32>
    %272 = arith.addf %270, %271 : vector<16x128xf32>
    %273 = vector.extract_strided_slice %272 {offsets = [0, 0], sizes = [16, 32], strides = [1, 1]} : vector<16x128xf32> to vector<16x32xf32>
    %274 = arith.negf %273 : vector<16x32xf32>
    %275 = math.exp %274 : vector<16x32xf32>
    %cst_97 = arith.constant 1.000000e+00 : f32
    %276 = vector.broadcast %cst_97 : f32 to vector<16x32xf32>
    %277 = arith.addf %276, %275 : vector<16x32xf32>
    %278 = arith.divf %276, %277 : vector<16x32xf32>
    %279 = vector.extract_strided_slice %272 {offsets = [0, 32], sizes = [16, 32], strides = [1, 1]} : vector<16x128xf32> to vector<16x32xf32>
    %280 = arith.negf %279 : vector<16x32xf32>
    %281 = math.exp %280 : vector<16x32xf32>
    %cst_98 = arith.constant 1.000000e+00 : f32
    %282 = vector.broadcast %cst_98 : f32 to vector<16x32xf32>
    %283 = arith.addf %282, %281 : vector<16x32xf32>
    %284 = arith.divf %282, %283 : vector<16x32xf32>
    %285 = vector.extract_strided_slice %272 {offsets = [0, 64], sizes = [16, 32], strides = [1, 1]} : vector<16x128xf32> to vector<16x32xf32>
    %286 = math.tanh %285 : vector<16x32xf32>
    %287 = vector.extract_strided_slice %272 {offsets = [0, 96], sizes = [16, 32], strides = [1, 1]} : vector<16x128xf32> to vector<16x32xf32>
    %288 = arith.negf %287 : vector<16x32xf32>
    %289 = math.exp %288 : vector<16x32xf32>
    %cst_99 = arith.constant 1.000000e+00 : f32
    %290 = vector.broadcast %cst_99 : f32 to vector<16x32xf32>
    %291 = arith.addf %290, %289 : vector<16x32xf32>
    %292 = arith.divf %290, %291 : vector<16x32xf32>
    %293 = arith.mulf %284, %268 : vector<16x32xf32>
    %294 = arith.mulf %278, %286 : vector<16x32xf32>
    %295 = arith.addf %293, %294 : vector<16x32xf32>
    %296 = math.tanh %295 : vector<16x32xf32>
    %297 = arith.mulf %292, %296 : vector<16x32xf32>
    %298 = arith.truncf %297 : vector<16x32xf32> to vector<16x32xbf16>
    %c16_100 = arith.constant 16 : index
    %c0_101 = arith.constant 0 : index
    %299 = vector.load %arg12[%c16_100, %c0_101] : memref<128x128xf32, #tpu.memory_space<vmem>>, vector<16x128xf32>
    %cst_102 = arith.constant dense<0.000000e+00> : vector<16x128xf32>
    %300 = tpu.matmul %298, %269, %cst_102 {dimension_numbers = #tpu.dot_dimension_numbers<[1], [0], [0], [1], [0, 0, 1, 1], [], []>} : vector<16x32xbf16>, vector<32x128xbf16>, vector<16x128xf32> -> vector<16x128xf32>
    %301 = arith.addf %299, %300 : vector<16x128xf32>
    %302 = vector.extract_strided_slice %301 {offsets = [0, 0], sizes = [16, 32], strides = [1, 1]} : vector<16x128xf32> to vector<16x32xf32>
    %303 = arith.negf %302 : vector<16x32xf32>
    %304 = math.exp %303 : vector<16x32xf32>
    %cst_103 = arith.constant 1.000000e+00 : f32
    %305 = vector.broadcast %cst_103 : f32 to vector<16x32xf32>
    %306 = arith.addf %305, %304 : vector<16x32xf32>
    %307 = arith.divf %305, %306 : vector<16x32xf32>
    %308 = vector.extract_strided_slice %301 {offsets = [0, 32], sizes = [16, 32], strides = [1, 1]} : vector<16x128xf32> to vector<16x32xf32>
    %309 = arith.negf %308 : vector<16x32xf32>
    %310 = math.exp %309 : vector<16x32xf32>
    %cst_104 = arith.constant 1.000000e+00 : f32
    %311 = vector.broadcast %cst_104 : f32 to vector<16x32xf32>
    %312 = arith.addf %311, %310 : vector<16x32xf32>
    %313 = arith.divf %311, %312 : vector<16x32xf32>
    %314 = vector.extract_strided_slice %301 {offsets = [0, 64], sizes = [16, 32], strides = [1, 1]} : vector<16x128xf32> to vector<16x32xf32>
    %315 = math.tanh %314 : vector<16x32xf32>
    %316 = vector.extract_strided_slice %301 {offsets = [0, 96], sizes = [16, 32], strides = [1, 1]} : vector<16x128xf32> to vector<16x32xf32>
    %317 = arith.negf %316 : vector<16x32xf32>
    %318 = math.exp %317 : vector<16x32xf32>
    %cst_105 = arith.constant 1.000000e+00 : f32
    %319 = vector.broadcast %cst_105 : f32 to vector<16x32xf32>
    %320 = arith.addf %319, %318 : vector<16x32xf32>
    %321 = arith.divf %319, %320 : vector<16x32xf32>
    %322 = arith.mulf %313, %295 : vector<16x32xf32>
    %323 = arith.mulf %307, %315 : vector<16x32xf32>
    %324 = arith.addf %322, %323 : vector<16x32xf32>
    %325 = math.tanh %324 : vector<16x32xf32>
    %326 = arith.mulf %321, %325 : vector<16x32xf32>
    %327 = arith.truncf %326 : vector<16x32xf32> to vector<16x32xbf16>
    %c32_106 = arith.constant 32 : index
    %c0_107 = arith.constant 0 : index
    %328 = vector.load %arg12[%c32_106, %c0_107] : memref<128x128xf32, #tpu.memory_space<vmem>>, vector<16x128xf32>
    %cst_108 = arith.constant dense<0.000000e+00> : vector<16x128xf32>
    %329 = tpu.matmul %327, %269, %cst_108 {dimension_numbers = #tpu.dot_dimension_numbers<[1], [0], [0], [1], [0, 0, 1, 1], [], []>} : vector<16x32xbf16>, vector<32x128xbf16>, vector<16x128xf32> -> vector<16x128xf32>
    %330 = arith.addf %328, %329 : vector<16x128xf32>
    %331 = vector.extract_strided_slice %330 {offsets = [0, 0], sizes = [16, 32], strides = [1, 1]} : vector<16x128xf32> to vector<16x32xf32>
    %332 = arith.negf %331 : vector<16x32xf32>
    %333 = math.exp %332 : vector<16x32xf32>
    %cst_109 = arith.constant 1.000000e+00 : f32
    %334 = vector.broadcast %cst_109 : f32 to vector<16x32xf32>
    %335 = arith.addf %334, %333 : vector<16x32xf32>
    %336 = arith.divf %334, %335 : vector<16x32xf32>
    %337 = vector.extract_strided_slice %330 {offsets = [0, 32], sizes = [16, 32], strides = [1, 1]} : vector<16x128xf32> to vector<16x32xf32>
    %338 = arith.negf %337 : vector<16x32xf32>
    %339 = math.exp %338 : vector<16x32xf32>
    %cst_110 = arith.constant 1.000000e+00 : f32
    %340 = vector.broadcast %cst_110 : f32 to vector<16x32xf32>
    %341 = arith.addf %340, %339 : vector<16x32xf32>
    %342 = arith.divf %340, %341 : vector<16x32xf32>
    %343 = vector.extract_strided_slice %330 {offsets = [0, 64], sizes = [16, 32], strides = [1, 1]} : vector<16x128xf32> to vector<16x32xf32>
    %344 = math.tanh %343 : vector<16x32xf32>
    %345 = vector.extract_strided_slice %330 {offsets = [0, 96], sizes = [16, 32], strides = [1, 1]} : vector<16x128xf32> to vector<16x32xf32>
    %346 = arith.negf %345 : vector<16x32xf32>
    %347 = math.exp %346 : vector<16x32xf32>
    %cst_111 = arith.constant 1.000000e+00 : f32
    %348 = vector.broadcast %cst_111 : f32 to vector<16x32xf32>
    %349 = arith.addf %348, %347 : vector<16x32xf32>
    %350 = arith.divf %348, %349 : vector<16x32xf32>
    %351 = arith.mulf %342, %324 : vector<16x32xf32>
    %352 = arith.mulf %336, %344 : vector<16x32xf32>
    %353 = arith.addf %351, %352 : vector<16x32xf32>
    %354 = math.tanh %353 : vector<16x32xf32>
    %355 = arith.mulf %350, %354 : vector<16x32xf32>
    %356 = arith.truncf %355 : vector<16x32xf32> to vector<16x32xbf16>
    %c48_112 = arith.constant 48 : index
    %c0_113 = arith.constant 0 : index
    %357 = vector.load %arg12[%c48_112, %c0_113] : memref<128x128xf32, #tpu.memory_space<vmem>>, vector<16x128xf32>
    %cst_114 = arith.constant dense<0.000000e+00> : vector<16x128xf32>
    %358 = tpu.matmul %356, %269, %cst_114 {dimension_numbers = #tpu.dot_dimension_numbers<[1], [0], [0], [1], [0, 0, 1, 1], [], []>} : vector<16x32xbf16>, vector<32x128xbf16>, vector<16x128xf32> -> vector<16x128xf32>
    %359 = arith.addf %357, %358 : vector<16x128xf32>
    %360 = vector.extract_strided_slice %359 {offsets = [0, 0], sizes = [16, 32], strides = [1, 1]} : vector<16x128xf32> to vector<16x32xf32>
    %361 = arith.negf %360 : vector<16x32xf32>
    %362 = math.exp %361 : vector<16x32xf32>
    %cst_115 = arith.constant 1.000000e+00 : f32
    %363 = vector.broadcast %cst_115 : f32 to vector<16x32xf32>
    %364 = arith.addf %363, %362 : vector<16x32xf32>
    %365 = arith.divf %363, %364 : vector<16x32xf32>
    %366 = vector.extract_strided_slice %359 {offsets = [0, 32], sizes = [16, 32], strides = [1, 1]} : vector<16x128xf32> to vector<16x32xf32>
    %367 = arith.negf %366 : vector<16x32xf32>
    %368 = math.exp %367 : vector<16x32xf32>
    %cst_116 = arith.constant 1.000000e+00 : f32
    %369 = vector.broadcast %cst_116 : f32 to vector<16x32xf32>
    %370 = arith.addf %369, %368 : vector<16x32xf32>
    %371 = arith.divf %369, %370 : vector<16x32xf32>
    %372 = vector.extract_strided_slice %359 {offsets = [0, 64], sizes = [16, 32], strides = [1, 1]} : vector<16x128xf32> to vector<16x32xf32>
    %373 = math.tanh %372 : vector<16x32xf32>
    %374 = vector.extract_strided_slice %359 {offsets = [0, 96], sizes = [16, 32], strides = [1, 1]} : vector<16x128xf32> to vector<16x32xf32>
    %375 = arith.negf %374 : vector<16x32xf32>
    %376 = math.exp %375 : vector<16x32xf32>
    %cst_117 = arith.constant 1.000000e+00 : f32
    %377 = vector.broadcast %cst_117 : f32 to vector<16x32xf32>
    %378 = arith.addf %377, %376 : vector<16x32xf32>
    %379 = arith.divf %377, %378 : vector<16x32xf32>
    %380 = arith.mulf %371, %353 : vector<16x32xf32>
    %381 = arith.mulf %365, %373 : vector<16x32xf32>
    %382 = arith.addf %380, %381 : vector<16x32xf32>
    %383 = math.tanh %382 : vector<16x32xf32>
    %384 = arith.mulf %379, %383 : vector<16x32xf32>
    %385 = arith.truncf %384 : vector<16x32xf32> to vector<16x32xbf16>
    %c64_118 = arith.constant 64 : index
    %c0_119 = arith.constant 0 : index
    %386 = vector.load %arg12[%c64_118, %c0_119] : memref<128x128xf32, #tpu.memory_space<vmem>>, vector<16x128xf32>
    %cst_120 = arith.constant dense<0.000000e+00> : vector<16x128xf32>
    %387 = tpu.matmul %385, %269, %cst_120 {dimension_numbers = #tpu.dot_dimension_numbers<[1], [0], [0], [1], [0, 0, 1, 1], [], []>} : vector<16x32xbf16>, vector<32x128xbf16>, vector<16x128xf32> -> vector<16x128xf32>
    %388 = arith.addf %386, %387 : vector<16x128xf32>
    %389 = vector.extract_strided_slice %388 {offsets = [0, 0], sizes = [16, 32], strides = [1, 1]} : vector<16x128xf32> to vector<16x32xf32>
    %390 = arith.negf %389 : vector<16x32xf32>
    %391 = math.exp %390 : vector<16x32xf32>
    %cst_121 = arith.constant 1.000000e+00 : f32
    %392 = vector.broadcast %cst_121 : f32 to vector<16x32xf32>
    %393 = arith.addf %392, %391 : vector<16x32xf32>
    %394 = arith.divf %392, %393 : vector<16x32xf32>
    %395 = vector.extract_strided_slice %388 {offsets = [0, 32], sizes = [16, 32], strides = [1, 1]} : vector<16x128xf32> to vector<16x32xf32>
    %396 = arith.negf %395 : vector<16x32xf32>
    %397 = math.exp %396 : vector<16x32xf32>
    %cst_122 = arith.constant 1.000000e+00 : f32
    %398 = vector.broadcast %cst_122 : f32 to vector<16x32xf32>
    %399 = arith.addf %398, %397 : vector<16x32xf32>
    %400 = arith.divf %398, %399 : vector<16x32xf32>
    %401 = vector.extract_strided_slice %388 {offsets = [0, 64], sizes = [16, 32], strides = [1, 1]} : vector<16x128xf32> to vector<16x32xf32>
    %402 = math.tanh %401 : vector<16x32xf32>
    %403 = vector.extract_strided_slice %388 {offsets = [0, 96], sizes = [16, 32], strides = [1, 1]} : vector<16x128xf32> to vector<16x32xf32>
    %404 = arith.negf %403 : vector<16x32xf32>
    %405 = math.exp %404 : vector<16x32xf32>
    %cst_123 = arith.constant 1.000000e+00 : f32
    %406 = vector.broadcast %cst_123 : f32 to vector<16x32xf32>
    %407 = arith.addf %406, %405 : vector<16x32xf32>
    %408 = arith.divf %406, %407 : vector<16x32xf32>
    %409 = arith.mulf %400, %382 : vector<16x32xf32>
    %410 = arith.mulf %394, %402 : vector<16x32xf32>
    %411 = arith.addf %409, %410 : vector<16x32xf32>
    %412 = math.tanh %411 : vector<16x32xf32>
    %413 = arith.mulf %408, %412 : vector<16x32xf32>
    %414 = arith.truncf %413 : vector<16x32xf32> to vector<16x32xbf16>
    %c80_124 = arith.constant 80 : index
    %c0_125 = arith.constant 0 : index
    %415 = vector.load %arg12[%c80_124, %c0_125] : memref<128x128xf32, #tpu.memory_space<vmem>>, vector<16x128xf32>
    %cst_126 = arith.constant dense<0.000000e+00> : vector<16x128xf32>
    %416 = tpu.matmul %414, %269, %cst_126 {dimension_numbers = #tpu.dot_dimension_numbers<[1], [0], [0], [1], [0, 0, 1, 1], [], []>} : vector<16x32xbf16>, vector<32x128xbf16>, vector<16x128xf32> -> vector<16x128xf32>
    %417 = arith.addf %415, %416 : vector<16x128xf32>
    %418 = vector.extract_strided_slice %417 {offsets = [0, 0], sizes = [16, 32], strides = [1, 1]} : vector<16x128xf32> to vector<16x32xf32>
    %419 = arith.negf %418 : vector<16x32xf32>
    %420 = math.exp %419 : vector<16x32xf32>
    %cst_127 = arith.constant 1.000000e+00 : f32
    %421 = vector.broadcast %cst_127 : f32 to vector<16x32xf32>
    %422 = arith.addf %421, %420 : vector<16x32xf32>
    %423 = arith.divf %421, %422 : vector<16x32xf32>
    %424 = vector.extract_strided_slice %417 {offsets = [0, 32], sizes = [16, 32], strides = [1, 1]} : vector<16x128xf32> to vector<16x32xf32>
    %425 = arith.negf %424 : vector<16x32xf32>
    %426 = math.exp %425 : vector<16x32xf32>
    %cst_128 = arith.constant 1.000000e+00 : f32
    %427 = vector.broadcast %cst_128 : f32 to vector<16x32xf32>
    %428 = arith.addf %427, %426 : vector<16x32xf32>
    %429 = arith.divf %427, %428 : vector<16x32xf32>
    %430 = vector.extract_strided_slice %417 {offsets = [0, 64], sizes = [16, 32], strides = [1, 1]} : vector<16x128xf32> to vector<16x32xf32>
    %431 = math.tanh %430 : vector<16x32xf32>
    %432 = vector.extract_strided_slice %417 {offsets = [0, 96], sizes = [16, 32], strides = [1, 1]} : vector<16x128xf32> to vector<16x32xf32>
    %433 = arith.negf %432 : vector<16x32xf32>
    %434 = math.exp %433 : vector<16x32xf32>
    %cst_129 = arith.constant 1.000000e+00 : f32
    %435 = vector.broadcast %cst_129 : f32 to vector<16x32xf32>
    %436 = arith.addf %435, %434 : vector<16x32xf32>
    %437 = arith.divf %435, %436 : vector<16x32xf32>
    %438 = arith.mulf %429, %411 : vector<16x32xf32>
    %439 = arith.mulf %423, %431 : vector<16x32xf32>
    %440 = arith.addf %438, %439 : vector<16x32xf32>
    %441 = math.tanh %440 : vector<16x32xf32>
    %442 = arith.mulf %437, %441 : vector<16x32xf32>
    %443 = arith.truncf %442 : vector<16x32xf32> to vector<16x32xbf16>
    %c96_130 = arith.constant 96 : index
    %c0_131 = arith.constant 0 : index
    %444 = vector.load %arg12[%c96_130, %c0_131] : memref<128x128xf32, #tpu.memory_space<vmem>>, vector<16x128xf32>
    %cst_132 = arith.constant dense<0.000000e+00> : vector<16x128xf32>
    %445 = tpu.matmul %443, %269, %cst_132 {dimension_numbers = #tpu.dot_dimension_numbers<[1], [0], [0], [1], [0, 0, 1, 1], [], []>} : vector<16x32xbf16>, vector<32x128xbf16>, vector<16x128xf32> -> vector<16x128xf32>
    %446 = arith.addf %444, %445 : vector<16x128xf32>
    %447 = vector.extract_strided_slice %446 {offsets = [0, 0], sizes = [16, 32], strides = [1, 1]} : vector<16x128xf32> to vector<16x32xf32>
    %448 = arith.negf %447 : vector<16x32xf32>
    %449 = math.exp %448 : vector<16x32xf32>
    %cst_133 = arith.constant 1.000000e+00 : f32
    %450 = vector.broadcast %cst_133 : f32 to vector<16x32xf32>
    %451 = arith.addf %450, %449 : vector<16x32xf32>
    %452 = arith.divf %450, %451 : vector<16x32xf32>
    %453 = vector.extract_strided_slice %446 {offsets = [0, 32], sizes = [16, 32], strides = [1, 1]} : vector<16x128xf32> to vector<16x32xf32>
    %454 = arith.negf %453 : vector<16x32xf32>
    %455 = math.exp %454 : vector<16x32xf32>
    %cst_134 = arith.constant 1.000000e+00 : f32
    %456 = vector.broadcast %cst_134 : f32 to vector<16x32xf32>
    %457 = arith.addf %456, %455 : vector<16x32xf32>
    %458 = arith.divf %456, %457 : vector<16x32xf32>
    %459 = vector.extract_strided_slice %446 {offsets = [0, 64], sizes = [16, 32], strides = [1, 1]} : vector<16x128xf32> to vector<16x32xf32>
    %460 = math.tanh %459 : vector<16x32xf32>
    %461 = vector.extract_strided_slice %446 {offsets = [0, 96], sizes = [16, 32], strides = [1, 1]} : vector<16x128xf32> to vector<16x32xf32>
    %462 = arith.negf %461 : vector<16x32xf32>
    %463 = math.exp %462 : vector<16x32xf32>
    %cst_135 = arith.constant 1.000000e+00 : f32
    %464 = vector.broadcast %cst_135 : f32 to vector<16x32xf32>
    %465 = arith.addf %464, %463 : vector<16x32xf32>
    %466 = arith.divf %464, %465 : vector<16x32xf32>
    %467 = arith.mulf %458, %440 : vector<16x32xf32>
    %468 = arith.mulf %452, %460 : vector<16x32xf32>
    %469 = arith.addf %467, %468 : vector<16x32xf32>
    %470 = math.tanh %469 : vector<16x32xf32>
    %471 = arith.mulf %466, %470 : vector<16x32xf32>
    %472 = arith.truncf %471 : vector<16x32xf32> to vector<16x32xbf16>
    %c112_136 = arith.constant 112 : index
    %c0_137 = arith.constant 0 : index
    %473 = vector.load %arg12[%c112_136, %c0_137] : memref<128x128xf32, #tpu.memory_space<vmem>>, vector<16x128xf32>
    %cst_138 = arith.constant dense<0.000000e+00> : vector<16x128xf32>
    %474 = tpu.matmul %472, %269, %cst_138 {dimension_numbers = #tpu.dot_dimension_numbers<[1], [0], [0], [1], [0, 0, 1, 1], [], []>} : vector<16x32xbf16>, vector<32x128xbf16>, vector<16x128xf32> -> vector<16x128xf32>
    %475 = arith.addf %473, %474 : vector<16x128xf32>
    %476 = vector.extract_strided_slice %475 {offsets = [0, 0], sizes = [16, 32], strides = [1, 1]} : vector<16x128xf32> to vector<16x32xf32>
    %477 = arith.negf %476 : vector<16x32xf32>
    %478 = math.exp %477 : vector<16x32xf32>
    %cst_139 = arith.constant 1.000000e+00 : f32
    %479 = vector.broadcast %cst_139 : f32 to vector<16x32xf32>
    %480 = arith.addf %479, %478 : vector<16x32xf32>
    %481 = arith.divf %479, %480 : vector<16x32xf32>
    %482 = vector.extract_strided_slice %475 {offsets = [0, 32], sizes = [16, 32], strides = [1, 1]} : vector<16x128xf32> to vector<16x32xf32>
    %483 = arith.negf %482 : vector<16x32xf32>
    %484 = math.exp %483 : vector<16x32xf32>
    %cst_140 = arith.constant 1.000000e+00 : f32
    %485 = vector.broadcast %cst_140 : f32 to vector<16x32xf32>
    %486 = arith.addf %485, %484 : vector<16x32xf32>
    %487 = arith.divf %485, %486 : vector<16x32xf32>
    %488 = vector.extract_strided_slice %475 {offsets = [0, 64], sizes = [16, 32], strides = [1, 1]} : vector<16x128xf32> to vector<16x32xf32>
    %489 = math.tanh %488 : vector<16x32xf32>
    %490 = vector.extract_strided_slice %475 {offsets = [0, 96], sizes = [16, 32], strides = [1, 1]} : vector<16x128xf32> to vector<16x32xf32>
    %491 = arith.negf %490 : vector<16x32xf32>
    %492 = math.exp %491 : vector<16x32xf32>
    %cst_141 = arith.constant 1.000000e+00 : f32
    %493 = vector.broadcast %cst_141 : f32 to vector<16x32xf32>
    %494 = arith.addf %493, %492 : vector<16x32xf32>
    %495 = arith.divf %493, %494 : vector<16x32xf32>
    %496 = arith.mulf %487, %469 : vector<16x32xf32>
    %497 = arith.mulf %481, %489 : vector<16x32xf32>
    %498 = arith.addf %496, %497 : vector<16x32xf32>
    %499 = math.tanh %498 : vector<16x32xf32>
    %500 = arith.mulf %495, %499 : vector<16x32xf32>
    %501 = arith.truncf %500 : vector<16x32xf32> to vector<16x32xbf16>
    %c1_142 = arith.constant 1 : index
    %c0_143 = arith.constant 0 : index
    %c0_144 = arith.constant 0 : index
    %502 = vector.load %arg9[%c1_142, %c0_143, %c0_144] : memref<2x16x32xbf16, #tpu.memory_space<vmem>>, vector<1x16x32xbf16>
    %503 = vector.shape_cast %502 : vector<1x16x32xbf16> to vector<16x32xbf16>
    %504 = vector.shape_cast %501 : vector<16x32xbf16> to vector<1x16x32xbf16>
    tpu.vector_store %arg9[%c1_142, %c0_143, %c0_144], %504 {strides = array<i32>} : memref<2x16x32xbf16, #tpu.memory_space<vmem>>, vector<1x16x32xbf16>,
    %c1_145 = arith.constant 1 : index
    %c0_146 = arith.constant 0 : index
    %c0_147 = arith.constant 0 : index
    %505 = vector.load %arg10[%c1_145, %c0_146, %c0_147] : memref<2x16x32xf32, #tpu.memory_space<vmem>>, vector<1x16x32xf32>
    %506 = vector.shape_cast %505 : vector<1x16x32xf32> to vector<16x32xf32>
    %507 = vector.shape_cast %498 : vector<16x32xf32> to vector<1x16x32xf32>
    tpu.vector_store %arg10[%c1_145, %c0_146, %c0_147], %507 {strides = array<i32>} : memref<2x16x32xf32, #tpu.memory_space<vmem>>, vector<1x16x32xf32>,
    return
  }
}

</mosaic_0001>

<llo_original>
// kernel: tpu_custom_call.1
$region0: #{tpu_custom_call.1}
  #allocation0 [shape = 'u32[]', space=smem, size = 0x4, offset = 0x4, fixed_abs, tag = 'smem constant byte address 0x4 - core index']
  #allocation1 [shape = 'u32[144,128]{1,0:T(1,128)}', space=vmem, size = 0x12000, scoped, tag = 'internal scratch']
  #allocation2 [shape = 'bf16[128,32]{1,0:T(16,128)(2,1)}', space=vmem, size = 0x8000, scoped, tag = 'scratch operand']
  #allocation3 [shape = 'f32[128,128]{1,0:T(8,128)}', space=vmem, size = 0x10000, scoped, tag = 'scratch operand']
  %s0 = inlined_call_operand.vmem [shape: bf16[128,32], index: 0, kind: input, shape index: {}]
  %s1 = inlined_call_operand.vmem [shape: bf16[2,16,32], index: 1, kind: input, shape index: {}]
  %s2 = inlined_call_operand.vmem [shape: f32[2,16,32], index: 2, kind: input, shape index: {}]
  %s3 = inlined_call_operand.vmem [shape: bf16[32,128], index: 3, kind: input, shape index: {}]
  %s4 = inlined_call_operand.vmem [shape: bf16[32,128], index: 4, kind: input, shape index: {}]
  %s5 = inlined_call_operand.vmem [shape: f32[1,128], index: 5, kind: input, shape index: {}]
  %s6 = inlined_call_operand.vmem [shape: bf16[32,128], index: 6, kind: input, shape index: {}]
  %s7 = inlined_call_operand.hbm [shape: bf16[32,128], index: 7, kind: input, shape index: {}]
  %s8 = inlined_call_operand.vmem [shape: f32[1,128], index: 8, kind: input, shape index: {}]
  %s9 = inlined_call_operand.hbm [shape: bf16[2,16,32], index: 9, kind: output, shape index: {0}]
  %s10 = inlined_call_operand.hbm [shape: f32[2,16,32], index: 10, kind: output, shape index: {1}]
  %11 = xla_tuple %s9, %s10
  %s12 = sld [smem:[#allocation0]]
  $region58: #{tpu_custom_call.1} parent=0
    _
  %s14 = ssub.s32 1, %s12
  %s15 = scalar_select 0, %s14, %s12
  $region1: #{tpu_custom_call.1} parent=0
    #allocation4 [shape = 'u8[8192]{0}', space=vmem, size = 0x2000, scoped, tag = 'input window, operand 7, single buffered']
    #allocation5 [shape = 's32[1]{0}', space=sflag, size = 0x4, scoped, tag = 'scoped memory for tpu_custom_call.1']
    #allocation6 [shape = 's32[1]{0}', space=sflag, size = 0x4, scoped, tag = 'scoped memory for tpu_custom_call.1']
    #allocation7 [shape = 'u8[8192]{0}', space=vmem, size = 0x2000, scoped, tag = 'output window, operand 0, single buffered']
    #allocation8 [shape = 'u8[16384]{0}', space=vmem, size = 0x4000, scoped, tag = 'output window, operand 1, single buffered']
    #allocation9 [shape = 's32[1]{0}', space=sflag, size = 0x4, scoped, tag = 'scoped memory for tpu_custom_call.1']
    %16 = vsyncpa [#allocation5], 0
    %17 = vsyncpa [#allocation6], 0
    %18 = vsyncpa [#allocation9], 0
    // Predicated region
    $region2: #{tpu_custom_call.1} parent=1 // pred_check
      _
    $region3: #{tpu_custom_call.1} parent=1 // pred_check_branch
      %20 = sbr.rel (0) target = $region5
    $region4: #{tpu_custom_call.1} parent=1 // pred_region
      _
    $region5: #{tpu_custom_call.1} parent=1 // pred_fallthru
      _
    // Predicated region
    $region6: #{tpu_custom_call.1} parent=1 // pred_check
      _
    $region7: #{tpu_custom_call.1} parent=1 // pred_check_branch
      %22 = sbr.rel (0) target = $region9
    $region8: #{tpu_custom_call.1} parent=1 // pred_region
      _
    $region9: #{tpu_custom_call.1} parent=1 // pred_fallthru
      _
    // Predicated region
    $region10: #{tpu_custom_call.1} parent=1 // pred_check
      _
    $region11: #{tpu_custom_call.1} parent=1 // pred_check_branch
      %24 = sbr.rel (0) target = $region13
    $region12: #{tpu_custom_call.1} parent=1 // pred_region
      _
    $region13: #{tpu_custom_call.1} parent=1 // pred_fallthru
      _
    // Predicated region
    $region14: #{tpu_custom_call.1} parent=1 // pred_check
      _
    $region15: #{tpu_custom_call.1} parent=1 // pred_check_branch
      %26 = sbr.rel (0) target = $region17
    $region16: #{tpu_custom_call.1} parent=1 // pred_region
      _
    $region17: #{tpu_custom_call.1} parent=1 // pred_fallthru
      _
    // Predicated region
    $region18: #{tpu_custom_call.1} parent=1 // pred_check
      _
    $region19: #{tpu_custom_call.1} parent=1 // pred_check_branch
      %28 = sbr.rel (0) target = $region21
    $region20: #{tpu_custom_call.1} parent=1 // pred_region
      _
    $region21: #{tpu_custom_call.1} parent=1 // pred_fallthru
      _
    // Predicated region
    $region22: #{tpu_custom_call.1} parent=1 // pred_check
      _
    $region23: #{tpu_custom_call.1} parent=1 // pred_check_branch
      %30 = sbr.rel (0) target = $region25
    $region24: #{tpu_custom_call.1} parent=1 // pred_region
      _
    $region25: #{tpu_custom_call.1} parent=1 // pred_fallthru
      _
    // Predicated region
    $region26: #{tpu_custom_call.1} parent=1 // pred_check
      _
    $region27: #{tpu_custom_call.1} parent=1 // pred_check_branch
      %32 = sbr.rel (0) target = $region29
    $region28: #{tpu_custom_call.1} parent=1 // pred_region
      _
    $region29: #{tpu_custom_call.1} parent=1 // pred_fallthru
      _
    // Predicated region
    $region30: #{tpu_custom_call.1} parent=1 // pred_check
      _
    $region31: #{tpu_custom_call.1} parent=1 // pred_check_branch
      %34 = sbr.rel (0) target = $region33
    $region32: #{tpu_custom_call.1} parent=1 // pred_region
      %s36 = ssub.s32 256, 256
      %37 = vsyncadd [#allocation5], %s36
      %s38 = sshll.u32 [#allocation4], 4
      %s39 = int_to_ptr.vmem [resolvable:$true] %s38
      %44 = dma.hbm_to_vmem [thread:$0]  %s7, 256, %s39, [#allocation5], 64, 64, 4
    $region33: #{tpu_custom_call.1} parent=1 // pred_fallthru
      _
    // Predicated region
    $region34: #{tpu_custom_call.1} parent=1 // pred_check
      _
    $region35: #{tpu_custom_call.1} parent=1 // pred_check_branch
      %46 = sbr.rel (0) target = $region37
    $region36: #{tpu_custom_call.1} parent=1 // pred_region
      _
    $region37: #{tpu_custom_call.1} parent=1 // pred_fallthru
      _
    // Predicated region
    $region38: #{tpu_custom_call.1} parent=1 // pred_check
      _
    $region39: #{tpu_custom_call.1} parent=1 // pred_check_branch
      %48 = sbr.rel (0) target = $region41
    $region40: #{tpu_custom_call.1} parent=1 // pred_region
      %49 = dma.done [#allocation5], 256
    $region41: #{tpu_custom_call.1} parent=1 // pred_fallthru
      _
    %v51 = vld [vmem:[%s0] sm:$0xf]
    %v52 = vld [vmem:[%s0 + $0x4] sm:$0xf]
    %v53 = vld [vmem:[%s0 + $0x8] sm:$0xf]
    %v54 = vld [vmem:[%s0 + $0xc] sm:$0xf]
    %v55 = vld [vmem:[%s0 + $0x10] sm:$0xf]
    %v56 = vld [vmem:[%s0 + $0x14] sm:$0xf]
    %v57 = vld [vmem:[%s0 + $0x18] sm:$0xf]
    %v58 = vld [vmem:[%s0 + $0x1c] sm:$0xf]
    %v59 = vld [vmem:[%s0 + $0x20] sm:$0xf]
    %v60 = vld [vmem:[%s0 + $0x24] sm:$0xf]
    %v61 = vld [vmem:[%s0 + $0x28] sm:$0xf]
    %v62 = vld [vmem:[%s0 + $0x2c] sm:$0xf]
    %v63 = vld [vmem:[%s0 + $0x30] sm:$0xf]
    %v64 = vld [vmem:[%s0 + $0x34] sm:$0xf]
    %v65 = vld [vmem:[%s0 + $0x38] sm:$0xf]
    %v66 = vld [vmem:[%s0 + $0x3c] sm:$0xf]
    %v67 = vld [vmem:[%s3] sm:$0xf]
    %v68 = vld [vmem:[%s3 + $0x4] sm:$0xf]
    %v69 = vld [vmem:[%s3 + $0x8] sm:$0xf]
    %v70 = vld [vmem:[%s3 + $0xc] sm:$0xf]
    %v71 = vld [vmem:[%s5] sm:$0x1]
    %v73 = vlaneseq
    %v74 = vshrl.u32 %v73, 7
    %v75 = vsub.s32 0, %v74
    %v76 = vrot.slane %v71, %v75
    %v94 = vunpack.c.l.b16 %v51
    %v95 = vunpack.c.l.b16 %v52
    %v96 = vunpack.c.l.b16 %v53
    %v97 = vunpack.c.l.b16 %v54
    %v98 = vunpack.c.l.b16 %v55
    %v99 = vunpack.c.l.b16 %v56
    %v100 = vunpack.c.l.b16 %v57
    %v101 = vunpack.c.l.b16 %v58
    %v102 = vunpack.c.l.b16 %v59
    %v103 = vunpack.c.l.b16 %v60
    %v104 = vunpack.c.l.b16 %v61
    %v105 = vunpack.c.l.b16 %v62
    %v106 = vunpack.c.l.b16 %v63
    %v107 = vunpack.c.l.b16 %v64
    %v108 = vunpack.c.l.b16 %v65
    %v109 = vunpack.c.l.b16 %v66
    %v110 = vpack.c.b16 %v95, %v94
    %v111 = vpack.c.b16 %v97, %v96
    %v112 = vpack.c.b16 %v99, %v98
    %v113 = vpack.c.b16 %v101, %v100
    %v114 = vpack.c.b16 %v103, %v102
    %v115 = vpack.c.b16 %v105, %v104
    %v116 = vpack.c.b16 %v107, %v106
    %v117 = vpack.c.b16 %v109, %v108
    %v122 = vunpack.c.l.b16 %v67
    %v123 = vunpack.c.l.b16 %v68
    %v124 = vunpack.c.l.b16 %v69
    %v125 = vunpack.c.l.b16 %v70
    %v126 = vpack.c.b16 %v123, %v122
    %v127 = vpack.c.b16 %v125, %v124
    %vm130 = vcmask 261120
    %v132 = vsel %vm130, %v110, 0
    %v135 = vsel %vm130, %v111, 0
    %v138 = vsel %vm130, %v112, 0
    %v141 = vsel %vm130, %v113, 0
    %v144 = vsel %vm130, %v114, 0
    %v147 = vsel %vm130, %v115, 0
    %v150 = vsel %vm130, %v116, 0
    %v153 = vsel %vm130, %v117, 0
    %155 = vmatprep.subr.bf16.mxu0 0
    %156 = vmatpush1.bf16.msra.mxu0 %v126
    %157 = vmatprep.subr.bf16.mxu0 0
    %158 = vmatpush1.bf16.msra.mxu0 %v127
    %159 = vmatprep.subr.bf16.mxu0 0
    %160 = vmatpush1.bf16.msra.mxu0 0
    %161 = vmatprep.subr.bf16.mxu0 0
    %162 = vmatpush1.bf16.msra.mxu0 0
    %163 = vmatprep.subr.bf16.mxu0 0
    %164 = vmatpush1.bf16.msra.mxu0 0
    %165 = vmatprep.subr.bf16.mxu0 0
    %166 = vmatpush1.bf16.msra.mxu0 0
    %167 = vmatprep.subr.bf16.mxu0 0
    %168 = vmatpush1.bf16.msra.mxu0 0
    %169 = vmatprep.subr.bf16.mxu0 0
    %170 = vmatpush1.bf16.msra.mxu0 0
    %171 = vmatprep.subr.bf16.mxu0 0
    %172 = vmatpush1.bf16.msra.mxu0 0
    %173 = vmatprep.subr.bf16.mxu0 0
    %174 = vmatpush1.bf16.msra.mxu0 0
    %175 = vmatprep.subr.bf16.mxu0 0
    %176 = vmatpush1.bf16.msra.mxu0 0
    %177 = vmatprep.subr.bf16.mxu0 0
    %178 = vmatpush1.bf16.msra.mxu0 0
    %179 = vmatprep.subr.bf16.mxu0 0
    %180 = vmatpush1.bf16.msra.mxu0 0
    %181 = vmatprep.subr.bf16.mxu0 0
    %182 = vmatpush1.bf16.msra.mxu0 0
    %183 = vmatprep.subr.bf16.mxu0 0
    %184 = vmatpush1.bf16.msra.mxu0 0
    %185 = vmatprep.subr.bf16.mxu0 0
    %186 = vmatpush1.bf16.msra.mxu0 0
    %187 = vmatprep.mubr.bf16.mxu0 0
    %188 = vmatmul.mubr.bf16.gmra.mrb[0].mxu0 %v132
    %v189 = vpop.f32.mrb[0].mxu0
    %v190 = vadd.f32 %v76, %v189
    %v191 = vpop.f32.mrb[0].mxu0
    %v192 = vpop.f32.mrb[0].mxu0
    %v193 = vadd.f32 %v76, %v192
    %v194 = vpop.f32.mrb[0].mxu0
    %195 = vmatprep.mubr.bf16.mxu0 0
    %196 = vmatmul.mubr.bf16.gmra.mrb[0].mxu0 %v135
    %v197 = vpop.f32.mrb[0].mxu0
    %v198 = vadd.f32 %v76, %v197
    %v199 = vpop.f32.mrb[0].mxu0
    %v200 = vpop.f32.mrb[0].mxu0
    %v201 = vadd.f32 %v76, %v200
    %v202 = vpop.f32.mrb[0].mxu0
    %203 = vmatprep.mubr.bf16.mxu0 0
    %204 = vmatmul.mubr.bf16.gmra.mrb[0].mxu0 %v138
    %v205 = vpop.f32.mrb[0].mxu0
    %v206 = vadd.f32 %v76, %v205
    %v207 = vpop.f32.mrb[0].mxu0
    %v208 = vpop.f32.mrb[0].mxu0
    %v209 = vadd.f32 %v76, %v208
    %v210 = vpop.f32.mrb[0].mxu0
    %211 = vmatprep.mubr.bf16.mxu0 0
    %212 = vmatmul.mubr.bf16.gmra.mrb[0].mxu0 %v141
    %v213 = vpop.f32.mrb[0].mxu0
    %v214 = vadd.f32 %v76, %v213
    %v215 = vpop.f32.mrb[0].mxu0
    %v216 = vpop.f32.mrb[0].mxu0
    %v217 = vadd.f32 %v76, %v216
    %v218 = vpop.f32.mrb[0].mxu0
    %219 = vmatprep.mubr.bf16.mxu0 0
    %220 = vmatmul.mubr.bf16.gmra.mrb[0].mxu0 %v144
    %v221 = vpop.f32.mrb[0].mxu0
    %v222 = vadd.f32 %v76, %v221
    %v223 = vpop.f32.mrb[0].mxu0
    %v224 = vpop.f32.mrb[0].mxu0
    %v225 = vadd.f32 %v76, %v224
    %v226 = vpop.f32.mrb[0].mxu0
    %227 = vmatprep.mubr.bf16.mxu0 0
    %228 = vmatmul.mubr.bf16.gmra.mrb[0].mxu0 %v147
    %v229 = vpop.f32.mrb[0].mxu0
    %v230 = vadd.f32 %v76, %v229
    %v231 = vpop.f32.mrb[0].mxu0
    %v232 = vpop.f32.mrb[0].mxu0
    %v233 = vadd.f32 %v76, %v232
    %v234 = vpop.f32.mrb[0].mxu0
    %235 = vmatprep.mubr.bf16.mxu0 0
    %236 = vmatmul.mubr.bf16.gmra.mrb[0].mxu0 %v150
    %v237 = vpop.f32.mrb[0].mxu0
    %v238 = vadd.f32 %v76, %v237
    %v239 = vpop.f32.mrb[0].mxu0
    %v240 = vpop.f32.mrb[0].mxu0
    %v241 = vadd.f32 %v76, %v240
    %v242 = vpop.f32.mrb[0].mxu0
    %243 = vmatprep.mubr.bf16.mxu0 0
    %244 = vmatmul.mubr.bf16.gmra.mrb[0].mxu0 %v153
    %v245 = vpop.f32.mrb[0].mxu0
    %v246 = vadd.f32 %v76, %v245
    %v247 = vpop.f32.mrb[0].mxu0
    %v248 = vpop.f32.mrb[0].mxu0
    %v249 = vadd.f32 %v76, %v248
    %v250 = vpop.f32.mrb[0].mxu0
    %251 = vdwg.mxu0
    %252 = vst [vmem:[#allocation3] sm:$0xff] %v190
    %253 = vst [vmem:[#allocation3 + $0x8] sm:$0xff] %v193
    %254 = vst [vmem:[#allocation3 + $0x10] sm:$0xff] %v198
    %255 = vst [vmem:[#allocation3 + $0x18] sm:$0xff] %v201
    %256 = vst [vmem:[#allocation3 + $0x20] sm:$0xff] %v206
    %257 = vst [vmem:[#allocation3 + $0x28] sm:$0xff] %v209
    %258 = vst [vmem:[#allocation3 + $0x30] sm:$0xff] %v214
    %259 = vst [vmem:[#allocation3 + $0x38] sm:$0xff] %v217
    %260 = vst [vmem:[#allocation3 + $0x40] sm:$0xff] %v222
    %261 = vst [vmem:[#allocation3 + $0x48] sm:$0xff] %v225
    %262 = vst [vmem:[#allocation3 + $0x50] sm:$0xff] %v230
    %263 = vst [vmem:[#allocation3 + $0x58] sm:$0xff] %v233
    %264 = vst [vmem:[#allocation3 + $0x60] sm:$0xff] %v238
    %265 = vst [vmem:[#allocation3 + $0x68] sm:$0xff] %v241
    %266 = vst [vmem:[#allocation3 + $0x70] sm:$0xff] %v246
    %267 = vst [vmem:[#allocation3 + $0x78] sm:$0xff] %v249
    %v268 = vld [vmem:[%s1] sm:$0xf]
    %v269 = vld [vmem:[%s1 + $0x4] sm:$0xf]
    %v270 = vld [vmem:[%s2] sm:$0xff]
    %v271 = vld [vmem:[%s2 + $0x8] sm:$0xff]
    %v272 = vld [vmem:[%s4] sm:$0xf]
    %v273 = vld [vmem:[%s4 + $0x4] sm:$0xf]
    %v274 = vld [vmem:[%s4 + $0x8] sm:$0xf]
    %v275 = vld [vmem:[%s4 + $0xc] sm:$0xf]
    %v276 = vld [vmem:[#allocation3] sm:$0xff]
    %v277 = vld [vmem:[#allocation3 + $0x8] sm:$0xff]
    %v280 = vunpack.c.l.b16 %v268
    %v281 = vunpack.c.l.b16 %v269
    %v282 = vpack.c.b16 %v281, %v280
    %v287 = vunpack.c.l.b16 %v272
    %v288 = vunpack.c.l.b16 %v273
    %v289 = vunpack.c.l.b16 %v274
    %v290 = vunpack.c.l.b16 %v275
    %v291 = vpack.c.b16 %v288, %v287
    %v292 = vpack.c.b16 %v290, %v289
    %v296 = vsel %vm130, %v282, 0
    %298 = vmatprep.subr.bf16.mxu0 0
    %299 = vmatpush1.bf16.msra.mxu0 %v291
    %300 = vmatprep.subr.bf16.mxu0 0
    %301 = vmatpush1.bf16.msra.mxu0 %v292
    %302 = vmatprep.subr.bf16.mxu0 0
    %303 = vmatpush1.bf16.msra.mxu0 0
    %304 = vmatprep.subr.bf16.mxu0 0
    %305 = vmatpush1.bf16.msra.mxu0 0
    %306 = vmatprep.subr.bf16.mxu0 0
    %307 = vmatpush1.bf16.msra.mxu0 0
    %308 = vmatprep.subr.bf16.mxu0 0
    %309 = vmatpush1.bf16.msra.mxu0 0
    %310 = vmatprep.subr.bf16.mxu0 0
    %311 = vmatpush1.bf16.msra.mxu0 0
    %312 = vmatprep.subr.bf16.mxu0 0
    %313 = vmatpush1.bf16.msra.mxu0 0
    %314 = vmatprep.subr.bf16.mxu0 0
    %315 = vmatpush1.bf16.msra.mxu0 0
    %316 = vmatprep.subr.bf16.mxu0 0
    %317 = vmatpush1.bf16.msra.mxu0 0
    %318 = vmatprep.subr.bf16.mxu0 0
    %319 = vmatpush1.bf16.msra.mxu0 0
    %320 = vmatprep.subr.bf16.mxu0 0
    %321 = vmatpush1.bf16.msra.mxu0 0
    %322 = vmatprep.subr.bf16.mxu0 0
    %323 = vmatpush1.bf16.msra.mxu0 0
    %324 = vmatprep.subr.bf16.mxu0 0
    %325 = vmatpush1.bf16.msra.mxu0 0
    %326 = vmatprep.subr.bf16.mxu0 0
    %327 = vmatpush1.bf16.msra.mxu0 0
    %328 = vmatprep.subr.bf16.mxu0 0
    %329 = vmatpush1.bf16.msra.mxu0 0
    %330 = vmatprep.mubr.bf16.mxu0 0
    %331 = vmatmul.mubr.bf16.gmra.mrb[0].mxu0 %v296
    %v332 = vpop.f32.mrb[0].mxu0
    %v333 = vadd.f32 0.0, %v332
    %v334 = vpop.f32.mrb[0].mxu0
    %v335 = vpop.f32.mrb[0].mxu0
    %v336 = vadd.f32 0.0, %v335
    %v337 = vpop.f32.mrb[0].mxu0
    %338 = vdwg.mxu0
    %v339 = vadd.f32 %v276, %v333
    %v340 = vadd.f32 %v277, %v336
    %v341 = vxor.u32 %v339, 2147483648
    %v342 = vxor.u32 %v340, 2147483648
    %v343 = vmul.f32 %v341, 1.442695
    %v344 = vpow.pop %v343
    %v345 = vmul.f32 %v342, 1.442695
    %v346 = vpow.pop %v345
    %v347 = vadd.f32 %v344, 1.0
    %v348 = vadd.f32 %v346, 1.0
    %v349 = vrcp.pop %v347
    %v350 = vmul.f32 1.0, %v349
    %v351 = vrcp.pop %v348
    %v352 = vmul.f32 1.0, %v351
    %v353 = vtanh.pop %v339
    %v354 = vtanh.pop %v340
    %357 = vrot.lane.b32.xlu0 %v270, 32
    %v358 = vpop.permute.xlu0 %357
    %359 = vrot.lane.b32.xlu0 %v271, 32
    %v360 = vpop.permute.xlu0 %359
    %v363 = vmul.f32 %v350, %v358
    %v364 = vmul.f32 %v352, %v360
    %367 = vrot.lane.b32.xlu0 %v353, 64
    %v368 = vpop.permute.xlu0 %367
    %369 = vrot.lane.b32.xlu0 %v354, 64
    %v370 = vpop.permute.xlu0 %369
    %v373 = vmul.f32 %v350, %v368
    %v374 = vmul.f32 %v352, %v370
    %377 = vrot.lane.b32.xlu0 %v373, 32
    %v378 = vpop.permute.xlu0 %377
    %379 = vrot.lane.b32.xlu0 %v374, 32
    %v380 = vpop.permute.xlu0 %379
    %v383 = vadd.f32 %v363, %v378
    %v384 = vadd.f32 %v364, %v380
    %v385 = vtanh.pop %v383
    %v386 = vtanh.pop %v384
    %389 = vrot.lane.b32.xlu0 %v385, 64
    %v390 = vpop.permute.xlu0 %389
    %391 = vrot.lane.b32.xlu0 %v386, 64
    %v392 = vpop.permute.xlu0 %391
    %v395 = vmul.f32 %v350, %v390
    %v396 = vmul.f32 %v352, %v392
    %v397 = vpack.c.bf16 %v396, %v395
    %399 = vrot.lane.b32.xlu0 %v397, 32
    %v400 = vpop.permute.xlu0 %399
    %402 = vst.msk [vmem:[#allocation2] sm:$0xff] %vm130, %v400
    %v403 = vld [vmem:[#allocation3 + $0x10] sm:$0xff]
    %v404 = vld [vmem:[#allocation3 + $0x18] sm:$0xff]
    %v406 = vsel %vm130, %v400, 0
    %408 = vmatprep.subr.bf16.mxu0 0
    %409 = vmatpush1.bf16.msra.mxu0 %v291
    %410 = vmatprep.subr.bf16.mxu0 0
    %411 = vmatpush1.bf16.msra.mxu0 %v292
    %412 = vmatprep.subr.bf16.mxu0 0
    %413 = vmatpush1.bf16.msra.mxu0 0
    %414 = vmatprep.subr.bf16.mxu0 0
    %415 = vmatpush1.bf16.msra.mxu0 0
    %416 = vmatprep.subr.bf16.mxu0 0
    %417 = vmatpush1.bf16.msra.mxu0 0
    %418 = vmatprep.subr.bf16.mxu0 0
    %419 = vmatpush1.bf16.msra.mxu0 0
    %420 = vmatprep.subr.bf16.mxu0 0
    %421 = vmatpush1.bf16.msra.mxu0 0
    %422 = vmatprep.subr.bf16.mxu0 0
    %423 = vmatpush1.bf16.msra.mxu0 0
    %424 = vmatprep.subr.bf16.mxu0 0
    %425 = vmatpush1.bf16.msra.mxu0 0
    %426 = vmatprep.subr.bf16.mxu0 0
    %427 = vmatpush1.bf16.msra.mxu0 0
    %428 = vmatprep.subr.bf16.mxu0 0
    %429 = vmatpush1.bf16.msra.mxu0 0
    %430 = vmatprep.subr.bf16.mxu0 0
    %431 = vmatpush1.bf16.msra.mxu0 0
    %432 = vmatprep.subr.bf16.mxu0 0
    %433 = vmatpush1.bf16.msra.mxu0 0
    %434 = vmatprep.subr.bf16.mxu0 0
    %435 = vmatpush1.bf16.msra.mxu0 0
    %436 = vmatprep.subr.bf16.mxu0 0
    %437 = vmatpush1.bf16.msra.mxu0 0
    %438 = vmatprep.subr.bf16.mxu0 0
    %439 = vmatpush1.bf16.msra.mxu0 0
    %440 = vmatprep.mubr.bf16.mxu0 0
    %441 = vmatmul.mubr.bf16.gmra.mrb[0].mxu0 %v406
    %v442 = vpop.f32.mrb[0].mxu0
    %v443 = vadd.f32 0.0, %v442
    %v444 = vpop.f32.mrb[0].mxu0
    %v445 = vpop.f32.mrb[0].mxu0
    %v446 = vadd.f32 0.0, %v445
    %v447 = vpop.f32.mrb[0].mxu0
    %448 = vdwg.mxu0
    %v449 = vadd.f32 %v403, %v443
    %v450 = vadd.f32 %v404, %v446
    %v451 = vxor.u32 %v449, 2147483648
    %v452 = vxor.u32 %v450, 2147483648
    %v453 = vmul.f32 %v451, 1.442695
    %v454 = vpow.pop %v453
    %v455 = vmul.f32 %v452, 1.442695
    %v456 = vpow.pop %v455
    %v457 = vadd.f32 %v454, 1.0
    %v458 = vadd.f32 %v456, 1.0
    %v459 = vrcp.pop %v457
    %v460 = vmul.f32 1.0, %v459
    %v461 = vrcp.pop %v458
    %v462 = vmul.f32 1.0, %v461
    %v463 = vtanh.pop %v449
    %v464 = vtanh.pop %v450
    %v465 = vmul.f32 %v460, %v383
    %v466 = vmul.f32 %v462, %v384
    %469 = vrot.lane.b32.xlu0 %v463, 64
    %v470 = vpop.permute.xlu0 %469
    %471 = vrot.lane.b32.xlu0 %v464, 64
    %v472 = vpop.permute.xlu0 %471
    %v475 = vmul.f32 %v460, %v470
    %v476 = vmul.f32 %v462, %v472
    %479 = vrot.lane.b32.xlu0 %v475, 32
    %v480 = vpop.permute.xlu0 %479
    %481 = vrot.lane.b32.xlu0 %v476, 32
    %v482 = vpop.permute.xlu0 %481
    %v485 = vadd.f32 %v465, %v480
    %v486 = vadd.f32 %v466, %v482
    %v487 = vtanh.pop %v485
    %v488 = vtanh.pop %v486
    %491 = vrot.lane.b32.xlu0 %v487, 64
    %v492 = vpop.permute.xlu0 %491
    %493 = vrot.lane.b32.xlu0 %v488, 64
    %v494 = vpop.permute.xlu0 %493
    %v497 = vmul.f32 %v460, %v492
    %v498 = vmul.f32 %v462, %v494
    %v499 = vpack.c.bf16 %v498, %v497
    %501 = vrot.lane.b32.xlu0 %v499, 32
    %v502 = vpop.permute.xlu0 %501
    %504 = vst.msk [vmem:[#allocation2 + $0x8] sm:$0xff] %vm130, %v502
    %v505 = vld [vmem:[#allocation3 + $0x20] sm:$0xff]
    %v506 = vld [vmem:[#allocation3 + $0x28] sm:$0xff]
    %v508 = vsel %vm130, %v502, 0
    %510 = vmatprep.subr.bf16.mxu0 0
    %511 = vmatpush1.bf16.msra.mxu0 %v291
    %512 = vmatprep.subr.bf16.mxu0 0
    %513 = vmatpush1.bf16.msra.mxu0 %v292
    %514 = vmatprep.subr.bf16.mxu0 0
    %515 = vmatpush1.bf16.msra.mxu0 0
    %516 = vmatprep.subr.bf16.mxu0 0
    %517 = vmatpush1.bf16.msra.mxu0 0
    %518 = vmatprep.subr.bf16.mxu0 0
    %519 = vmatpush1.bf16.msra.mxu0 0
    %520 = vmatprep.subr.bf16.mxu0 0
    %521 = vmatpush1.bf16.msra.mxu0 0
    %522 = vmatprep.subr.bf16.mxu0 0
    %523 = vmatpush1.bf16.msra.mxu0 0
    %524 = vmatprep.subr.bf16.mxu0 0
    %525 = vmatpush1.bf16.msra.mxu0 0
    %526 = vmatprep.subr.bf16.mxu0 0
    %527 = vmatpush1.bf16.msra.mxu0 0
    %528 = vmatprep.subr.bf16.mxu0 0
    %529 = vmatpush1.bf16.msra.mxu0 0
    %530 = vmatprep.subr.bf16.mxu0 0
    %531 = vmatpush1.bf16.msra.mxu0 0
    %532 = vmatprep.subr.bf16.mxu0 0
    %533 = vmatpush1.bf16.msra.mxu0 0
    %534 = vmatprep.subr.bf16.mxu0 0
    %535 = vmatpush1.bf16.msra.mxu0 0
    %536 = vmatprep.subr.bf16.mxu0 0
    %537 = vmatpush1.bf16.msra.mxu0 0
    %538 = vmatprep.subr.bf16.mxu0 0
    %539 = vmatpush1.bf16.msra.mxu0 0
    %540 = vmatprep.subr.bf16.mxu0 0
    %541 = vmatpush1.bf16.msra.mxu0 0
    %542 = vmatprep.mubr.bf16.mxu0 0
    %543 = vmatmul.mubr.bf16.gmra.mrb[0].mxu0 %v508
    %v544 = vpop.f32.mrb[0].mxu0
    %v545 = vadd.f32 0.0, %v544
    %v546 = vpop.f32.mrb[0].mxu0
    %v547 = vpop.f32.mrb[0].mxu0
    %v548 = vadd.f32 0.0, %v547
    %v549 = vpop.f32.mrb[0].mxu0
    %550 = vdwg.mxu0
    %v551 = vadd.f32 %v505, %v545
    %v552 = vadd.f32 %v506, %v548
    %v553 = vxor.u32 %v551, 2147483648
    %v554 = vxor.u32 %v552, 2147483648
    %v555 = vmul.f32 %v553, 1.442695
    %v556 = vpow.pop %v555
    %v557 = vmul.f32 %v554, 1.442695
    %v558 = vpow.pop %v557
    %v559 = vadd.f32 %v556, 1.0
    %v560 = vadd.f32 %v558, 1.0
    %v561 = vrcp.pop %v559
    %v562 = vmul.f32 1.0, %v561
    %v563 = vrcp.pop %v560
    %v564 = vmul.f32 1.0, %v563
    %v565 = vtanh.pop %v551
    %v566 = vtanh.pop %v552
    %v567 = vmul.f32 %v562, %v485
    %v568 = vmul.f32 %v564, %v486
    %571 = vrot.lane.b32.xlu0 %v565, 64
    %v572 = vpop.permute.xlu0 %571
    %573 = vrot.lane.b32.xlu0 %v566, 64
    %v574 = vpop.permute.xlu0 %573
    %v577 = vmul.f32 %v562, %v572
    %v578 = vmul.f32 %v564, %v574
    %581 = vrot.lane.b32.xlu0 %v577, 32
    %v582 = vpop.permute.xlu0 %581
    %583 = vrot.lane.b32.xlu0 %v578, 32
    %v584 = vpop.permute.xlu0 %583
    %v587 = vadd.f32 %v567, %v582
    %v588 = vadd.f32 %v568, %v584
    %v589 = vtanh.pop %v587
    %v590 = vtanh.pop %v588
    %593 = vrot.lane.b32.xlu0 %v589, 64
    %v594 = vpop.permute.xlu0 %593
    %595 = vrot.lane.b32.xlu0 %v590, 64
    %v596 = vpop.permute.xlu0 %595
    %v599 = vmul.f32 %v562, %v594
    %v600 = vmul.f32 %v564, %v596
    %v601 = vpack.c.bf16 %v600, %v599
    %603 = vrot.lane.b32.xlu0 %v601, 32
    %v604 = vpop.permute.xlu0 %603
    %606 = vst.msk [vmem:[#allocation2 + $0x10] sm:$0xff] %vm130, %v604
    %v607 = vld [vmem:[#allocation3 + $0x30] sm:$0xff]
    %v608 = vld [vmem:[#allocation3 + $0x38] sm:$0xff]
    %v610 = vsel %vm130, %v604, 0
    %612 = vmatprep.subr.bf16.mxu0 0
    %613 = vmatpush1.bf16.msra.mxu0 %v291
    %614 = vmatprep.subr.bf16.mxu0 0
    %615 = vmatpush1.bf16.msra.mxu0 %v292
    %616 = vmatprep.subr.bf16.mxu0 0
    %617 = vmatpush1.bf16.msra.mxu0 0
    %618 = vmatprep.subr.bf16.mxu0 0
    %619 = vmatpush1.bf16.msra.mxu0 0
    %620 = vmatprep.subr.bf16.mxu0 0
    %621 = vmatpush1.bf16.msra.mxu0 0
    %622 = vmatprep.subr.bf16.mxu0 0
    %623 = vmatpush1.bf16.msra.mxu0 0
    %624 = vmatprep.subr.bf16.mxu0 0
    %625 = vmatpush1.bf16.msra.mxu0 0
    %626 = vmatprep.subr.bf16.mxu0 0
    %627 = vmatpush1.bf16.msra.mxu0 0
    %628 = vmatprep.subr.bf16.mxu0 0
    %629 = vmatpush1.bf16.msra.mxu0 0
    %630 = vmatprep.subr.bf16.mxu0 0
    %631 = vmatpush1.bf16.msra.mxu0 0
    %632 = vmatprep.subr.bf16.mxu0 0
    %633 = vmatpush1.bf16.msra.mxu0 0
    %634 = vmatprep.subr.bf16.mxu0 0
    %635 = vmatpush1.bf16.msra.mxu0 0
    %636 = vmatprep.subr.bf16.mxu0 0
    %637 = vmatpush1.bf16.msra.mxu0 0
    %638 = vmatprep.subr.bf16.mxu0 0
    %639 = vmatpush1.bf16.msra.mxu0 0
    %640 = vmatprep.subr.bf16.mxu0 0
    %641 = vmatpush1.bf16.msra.mxu0 0
    %642 = vmatprep.subr.bf16.mxu0 0
    %643 = vmatpush1.bf16.msra.mxu0 0
    %644 = vmatprep.mubr.bf16.mxu0 0
    %645 = vmatmul.mubr.bf16.gmra.mrb[0].mxu0 %v610
    %v646 = vpop.f32.mrb[0].mxu0
    %v647 = vadd.f32 0.0, %v646
    %v648 = vpop.f32.mrb[0].mxu0
    %v649 = vpop.f32.mrb[0].mxu0
    %v650 = vadd.f32 0.0, %v649
    %v651 = vpop.f32.mrb[0].mxu0
    %652 = vdwg.mxu0
    %v653 = vadd.f32 %v607, %v647
    %v654 = vadd.f32 %v608, %v650
    %v655 = vxor.u32 %v653, 2147483648
    %v656 = vxor.u32 %v654, 2147483648
    %v657 = vmul.f32 %v655, 1.442695
    %v658 = vpow.pop %v657
    %v659 = vmul.f32 %v656, 1.442695
    %v660 = vpow.pop %v659
    %v661 = vadd.f32 %v658, 1.0
    %v662 = vadd.f32 %v660, 1.0
    %v663 = vrcp.pop %v661
    %v664 = vmul.f32 1.0, %v663
    %v665 = vrcp.pop %v662
    %v666 = vmul.f32 1.0, %v665
    %v667 = vtanh.pop %v653
    %v668 = vtanh.pop %v654
    %v669 = vmul.f32 %v664, %v587
    %v670 = vmul.f32 %v666, %v588
    %673 = vrot.lane.b32.xlu0 %v667, 64
    %v674 = vpop.permute.xlu0 %673
    %675 = vrot.lane.b32.xlu0 %v668, 64
    %v676 = vpop.permute.xlu0 %675
    %v679 = vmul.f32 %v664, %v674
    %v680 = vmul.f32 %v666, %v676
    %683 = vrot.lane.b32.xlu0 %v679, 32
    %v684 = vpop.permute.xlu0 %683
    %685 = vrot.lane.b32.xlu0 %v680, 32
    %v686 = vpop.permute.xlu0 %685
    %v689 = vadd.f32 %v669, %v684
    %v690 = vadd.f32 %v670, %v686
    %v691 = vtanh.pop %v689
    %v692 = vtanh.pop %v690
    %695 = vrot.lane.b32.xlu0 %v691, 64
    %v696 = vpop.permute.xlu0 %695
    %697 = vrot.lane.b32.xlu0 %v692, 64
    %v698 = vpop.permute.xlu0 %697
    %v701 = vmul.f32 %v664, %v696
    %v702 = vmul.f32 %v666, %v698
    %v703 = vpack.c.bf16 %v702, %v701
    %705 = vrot.lane.b32.xlu0 %v703, 32
    %v706 = vpop.permute.xlu0 %705
    %708 = vst.msk [vmem:[#allocation2 + $0x18] sm:$0xff] %vm130, %v706
    %v709 = vld [vmem:[#allocation3 + $0x40] sm:$0xff]
    %v710 = vld [vmem:[#allocation3 + $0x48] sm:$0xff]
    %v712 = vsel %vm130, %v706, 0
    %714 = vmatprep.subr.bf16.mxu0 0
    %715 = vmatpush1.bf16.msra.mxu0 %v291
    %716 = vmatprep.subr.bf16.mxu0 0
    %717 = vmatpush1.bf16.msra.mxu0 %v292
    %718 = vmatprep.subr.bf16.mxu0 0
    %719 = vmatpush1.bf16.msra.mxu0 0
    %720 = vmatprep.subr.bf16.mxu0 0
    %721 = vmatpush1.bf16.msra.mxu0 0
    %722 = vmatprep.subr.bf16.mxu0 0
    %723 = vmatpush1.bf16.msra.mxu0 0
    %724 = vmatprep.subr.bf16.mxu0 0
    %725 = vmatpush1.bf16.msra.mxu0 0
    %726 = vmatprep.subr.bf16.mxu0 0
    %727 = vmatpush1.bf16.msra.mxu0 0
    %728 = vmatprep.subr.bf16.mxu0 0
    %729 = vmatpush1.bf16.msra.mxu0 0
    %730 = vmatprep.subr.bf16.mxu0 0
    %731 = vmatpush1.bf16.msra.mxu0 0
    %732 = vmatprep.subr.bf16.mxu0 0
    %733 = vmatpush1.bf16.msra.mxu0 0
    %734 = vmatprep.subr.bf16.mxu0 0
    %735 = vmatpush1.bf16.msra.mxu0 0
    %736 = vmatprep.subr.bf16.mxu0 0
    %737 = vmatpush1.bf16.msra.mxu0 0
    %738 = vmatprep.subr.bf16.mxu0 0
    %739 = vmatpush1.bf16.msra.mxu0 0
    %740 = vmatprep.subr.bf16.mxu0 0
    %741 = vmatpush1.bf16.msra.mxu0 0
    %742 = vmatprep.subr.bf16.mxu0 0
    %743 = vmatpush1.bf16.msra.mxu0 0
    %744 = vmatprep.subr.bf16.mxu0 0
    %745 = vmatpush1.bf16.msra.mxu0 0
    %746 = vmatprep.mubr.bf16.mxu0 0
    %747 = vmatmul.mubr.bf16.gmra.mrb[0].mxu0 %v712
    %v748 = vpop.f32.mrb[0].mxu0
    %v749 = vadd.f32 0.0, %v748
    %v750 = vpop.f32.mrb[0].mxu0
    %v751 = vpop.f32.mrb[0].mxu0
    %v752 = vadd.f32 0.0, %v751
    %v753 = vpop.f32.mrb[0].mxu0
    %754 = vdwg.mxu0
    %v755 = vadd.f32 %v709, %v749
    %v756 = vadd.f32 %v710, %v752
    %v757 = vxor.u32 %v755, 2147483648
    %v758 = vxor.u32 %v756, 2147483648
    %v759 = vmul.f32 %v757, 1.442695
    %v760 = vpow.pop %v759
    %v761 = vmul.f32 %v758, 1.442695
    %v762 = vpow.pop %v761
    %v763 = vadd.f32 %v760, 1.0
    %v764 = vadd.f32 %v762, 1.0
    %v765 = vrcp.pop %v763
    %v766 = vmul.f32 1.0, %v765
    %v767 = vrcp.pop %v764
    %v768 = vmul.f32 1.0, %v767
    %v769 = vtanh.pop %v755
    %v770 = vtanh.pop %v756
    %v771 = vmul.f32 %v766, %v689
    %v772 = vmul.f32 %v768, %v690
    %775 = vrot.lane.b32.xlu0 %v769, 64
    %v776 = vpop.permute.xlu0 %775
    %777 = vrot.lane.b32.xlu0 %v770, 64
    %v778 = vpop.permute.xlu0 %777
    %v781 = vmul.f32 %v766, %v776
    %v782 = vmul.f32 %v768, %v778
    %785 = vrot.lane.b32.xlu0 %v781, 32
    %v786 = vpop.permute.xlu0 %785
    %787 = vrot.lane.b32.xlu0 %v782, 32
    %v788 = vpop.permute.xlu0 %787
    %v791 = vadd.f32 %v771, %v786
    %v792 = vadd.f32 %v772, %v788
    %v793 = vtanh.pop %v791
    %v794 = vtanh.pop %v792
    %797 = vrot.lane.b32.xlu0 %v793, 64
    %v798 = vpop.permute.xlu0 %797
    %799 = vrot.lane.b32.xlu0 %v794, 64
    %v800 = vpop.permute.xlu0 %799
    %v803 = vmul.f32 %v766, %v798
    %v804 = vmul.f32 %v768, %v800
    %v805 = vpack.c.bf16 %v804, %v803
    %807 = vrot.lane.b32.xlu0 %v805, 32
    %v808 = vpop.permute.xlu0 %807
    %810 = vst.msk [vmem:[#allocation2 + $0x20] sm:$0xff] %vm130, %v808
    %v811 = vld [vmem:[#allocation3 + $0x50] sm:$0xff]
    %v812 = vld [vmem:[#allocation3 + $0x58] sm:$0xff]
    %v814 = vsel %vm130, %v808, 0
    %816 = vmatprep.subr.bf16.mxu0 0
    %817 = vmatpush1.bf16.msra.mxu0 %v291
    %818 = vmatprep.subr.bf16.mxu0 0
    %819 = vmatpush1.bf16.msra.mxu0 %v292
    %820 = vmatprep.subr.bf16.mxu0 0
    %821 = vmatpush1.bf16.msra.mxu0 0
    %822 = vmatprep.subr.bf16.mxu0 0
    %823 = vmatpush1.bf16.msra.mxu0 0
    %824 = vmatprep.subr.bf16.mxu0 0
    %825 = vmatpush1.bf16.msra.mxu0 0
    %826 = vmatprep.subr.bf16.mxu0 0
    %827 = vmatpush1.bf16.msra.mxu0 0
    %828 = vmatprep.subr.bf16.mxu0 0
    %829 = vmatpush1.bf16.msra.mxu0 0
    %830 = vmatprep.subr.bf16.mxu0 0
    %831 = vmatpush1.bf16.msra.mxu0 0
    %832 = vmatprep.subr.bf16.mxu0 0
    %833 = vmatpush1.bf16.msra.mxu0 0
    %834 = vmatprep.subr.bf16.mxu0 0
    %835 = vmatpush1.bf16.msra.mxu0 0
    %836 = vmatprep.subr.bf16.mxu0 0
    %837 = vmatpush1.bf16.msra.mxu0 0
    %838 = vmatprep.subr.bf16.mxu0 0
    %839 = vmatpush1.bf16.msra.mxu0 0
    %840 = vmatprep.subr.bf16.mxu0 0
    %841 = vmatpush1.bf16.msra.mxu0 0
    %842 = vmatprep.subr.bf16.mxu0 0
    %843 = vmatpush1.bf16.msra.mxu0 0
    %844 = vmatprep.subr.bf16.mxu0 0
    %845 = vmatpush1.bf16.msra.mxu0 0
    %846 = vmatprep.subr.bf16.mxu0 0
    %847 = vmatpush1.bf16.msra.mxu0 0
    %848 = vmatprep.mubr.bf16.mxu0 0
    %849 = vmatmul.mubr.bf16.gmra.mrb[0].mxu0 %v814
    %v850 = vpop.f32.mrb[0].mxu0
    %v851 = vadd.f32 0.0, %v850
    %v852 = vpop.f32.mrb[0].mxu0
    %v853 = vpop.f32.mrb[0].mxu0
    %v854 = vadd.f32 0.0, %v853
    %v855 = vpop.f32.mrb[0].mxu0
    %856 = vdwg.mxu0
    %v857 = vadd.f32 %v811, %v851
    %v858 = vadd.f32 %v812, %v854
    %v859 = vxor.u32 %v857, 2147483648
    %v860 = vxor.u32 %v858, 2147483648
    %v861 = vmul.f32 %v859, 1.442695
    %v862 = vpow.pop %v861
    %v863 = vmul.f32 %v860, 1.442695
    %v864 = vpow.pop %v863
    %v865 = vadd.f32 %v862, 1.0
    %v866 = vadd.f32 %v864, 1.0
    %v867 = vrcp.pop %v865
    %v868 = vmul.f32 1.0, %v867
    %v869 = vrcp.pop %v866
    %v870 = vmul.f32 1.0, %v869
    %v871 = vtanh.pop %v857
    %v872 = vtanh.pop %v858
    %v873 = vmul.f32 %v868, %v791
    %v874 = vmul.f32 %v870, %v792
    %877 = vrot.lane.b32.xlu0 %v871, 64
    %v878 = vpop.permute.xlu0 %877
    %879 = vrot.lane.b32.xlu0 %v872, 64
    %v880 = vpop.permute.xlu0 %879
    %v883 = vmul.f32 %v868, %v878
    %v884 = vmul.f32 %v870, %v880
    %887 = vrot.lane.b32.xlu0 %v883, 32
    %v888 = vpop.permute.xlu0 %887
    %889 = vrot.lane.b32.xlu0 %v884, 32
    %v890 = vpop.permute.xlu0 %889
    %v893 = vadd.f32 %v873, %v888
    %v894 = vadd.f32 %v874, %v890
    %v895 = vtanh.pop %v893
    %v896 = vtanh.pop %v894
    %899 = vrot.lane.b32.xlu0 %v895, 64
    %v900 = vpop.permute.xlu0 %899
    %901 = vrot.lane.b32.xlu0 %v896, 64
    %v902 = vpop.permute.xlu0 %901
    %v905 = vmul.f32 %v868, %v900
    %v906 = vmul.f32 %v870, %v902
    %v907 = vpack.c.bf16 %v906, %v905
    %909 = vrot.lane.b32.xlu0 %v907, 32
    %v910 = vpop.permute.xlu0 %909
    %912 = vst.msk [vmem:[#allocation2 + $0x28] sm:$0xff] %vm130, %v910
    %v913 = vld [vmem:[#allocation3 + $0x60] sm:$0xff]
    %v914 = vld [vmem:[#allocation3 + $0x68] sm:$0xff]
    %v916 = vsel %vm130, %v910, 0
    %918 = vmatprep.subr.bf16.mxu0 0
    %919 = vmatpush1.bf16.msra.mxu0 %v291
    %920 = vmatprep.subr.bf16.mxu0 0
    %921 = vmatpush1.bf16.msra.mxu0 %v292
    %922 = vmatprep.subr.bf16.mxu0 0
    %923 = vmatpush1.bf16.msra.mxu0 0
    %924 = vmatprep.subr.bf16.mxu0 0
    %925 = vmatpush1.bf16.msra.mxu0 0
    %926 = vmatprep.subr.bf16.mxu0 0
    %927 = vmatpush1.bf16.msra.mxu0 0
    %928 = vmatprep.subr.bf16.mxu0 0
    %929 = vmatpush1.bf16.msra.mxu0 0
    %930 = vmatprep.subr.bf16.mxu0 0
    %931 = vmatpush1.bf16.msra.mxu0 0
    %932 = vmatprep.subr.bf16.mxu0 0
    %933 = vmatpush1.bf16.msra.mxu0 0
    %934 = vmatprep.subr.bf16.mxu0 0
    %935 = vmatpush1.bf16.msra.mxu0 0
    %936 = vmatprep.subr.bf16.mxu0 0
    %937 = vmatpush1.bf16.msra.mxu0 0
    %938 = vmatprep.subr.bf16.mxu0 0
    %939 = vmatpush1.bf16.msra.mxu0 0
    %940 = vmatprep.subr.bf16.mxu0 0
    %941 = vmatpush1.bf16.msra.mxu0 0
    %942 = vmatprep.subr.bf16.mxu0 0
    %943 = vmatpush1.bf16.msra.mxu0 0
    %944 = vmatprep.subr.bf16.mxu0 0
    %945 = vmatpush1.bf16.msra.mxu0 0
    %946 = vmatprep.subr.bf16.mxu0 0
    %947 = vmatpush1.bf16.msra.mxu0 0
    %948 = vmatprep.subr.bf16.mxu0 0
    %949 = vmatpush1.bf16.msra.mxu0 0
    %950 = vmatprep.mubr.bf16.mxu0 0
    %951 = vmatmul.mubr.bf16.gmra.mrb[0].mxu0 %v916
    %v952 = vpop.f32.mrb[0].mxu0
    %v953 = vadd.f32 0.0, %v952
    %v954 = vpop.f32.mrb[0].mxu0
    %v955 = vpop.f32.mrb[0].mxu0
    %v956 = vadd.f32 0.0, %v955
    %v957 = vpop.f32.mrb[0].mxu0
    %958 = vdwg.mxu0
    %v959 = vadd.f32 %v913, %v953
    %v960 = vadd.f32 %v914, %v956
    %v961 = vxor.u32 %v959, 2147483648
    %v962 = vxor.u32 %v960, 2147483648
    %v963 = vmul.f32 %v961, 1.442695
    %v964 = vpow.pop %v963
    %v965 = vmul.f32 %v962, 1.442695
    %v966 = vpow.pop %v965
    %v967 = vadd.f32 %v964, 1.0
    %v968 = vadd.f32 %v966, 1.0
    %v969 = vrcp.pop %v967
    %v970 = vmul.f32 1.0, %v969
    %v971 = vrcp.pop %v968
    %v972 = vmul.f32 1.0, %v971
    %v973 = vtanh.pop %v959
    %v974 = vtanh.pop %v960
    %v975 = vmul.f32 %v970, %v893
    %v976 = vmul.f32 %v972, %v894
    %979 = vrot.lane.b32.xlu0 %v973, 64
    %v980 = vpop.permute.xlu0 %979
    %981 = vrot.lane.b32.xlu0 %v974, 64
    %v982 = vpop.permute.xlu0 %981
    %v985 = vmul.f32 %v970, %v980
    %v986 = vmul.f32 %v972, %v982
    %989 = vrot.lane.b32.xlu0 %v985, 32
    %v990 = vpop.permute.xlu0 %989
    %991 = vrot.lane.b32.xlu0 %v986, 32
    %v992 = vpop.permute.xlu0 %991
    %v995 = vadd.f32 %v975, %v990
    %v996 = vadd.f32 %v976, %v992
    %v997 = vtanh.pop %v995
    %v998 = vtanh.pop %v996
    %1001 = vrot.lane.b32.xlu0 %v997, 64
    %v1002 = vpop.permute.xlu0 %1001
    %1003 = vrot.lane.b32.xlu0 %v998, 64
    %v1004 = vpop.permute.xlu0 %1003
    %v1007 = vmul.f32 %v970, %v1002
    %v1008 = vmul.f32 %v972, %v1004
    %v1009 = vpack.c.bf16 %v1008, %v1007
    %1011 = vrot.lane.b32.xlu0 %v1009, 32
    %v1012 = vpop.permute.xlu0 %1011
    %1014 = vst.msk [vmem:[#allocation2 + $0x30] sm:$0xff] %vm130, %v1012
    %v1015 = vld [vmem:[#allocation3 + $0x70] sm:$0xff]
    %v1016 = vld [vmem:[#allocation3 + $0x78] sm:$0xff]
    %v1018 = vsel %vm130, %v1012, 0
    %1020 = vmatprep.subr.bf16.mxu0 0
    %1021 = vmatpush1.bf16.msra.mxu0 %v291
    %1022 = vmatprep.subr.bf16.mxu0 0
    %1023 = vmatpush1.bf16.msra.mxu0 %v292
    %1024 = vmatprep.subr.bf16.mxu0 0
    %1025 = vmatpush1.bf16.msra.mxu0 0
    %1026 = vmatprep.subr.bf16.mxu0 0
    %1027 = vmatpush1.bf16.msra.mxu0 0
    %1028 = vmatprep.subr.bf16.mxu0 0
    %1029 = vmatpush1.bf16.msra.mxu0 0
    %1030 = vmatprep.subr.bf16.mxu0 0
    %1031 = vmatpush1.bf16.msra.mxu0 0
    %1032 = vmatprep.subr.bf16.mxu0 0
    %1033 = vmatpush1.bf16.msra.mxu0 0
    %1034 = vmatprep.subr.bf16.mxu0 0
    %1035 = vmatpush1.bf16.msra.mxu0 0
    %1036 = vmatprep.subr.bf16.mxu0 0
    %1037 = vmatpush1.bf16.msra.mxu0 0
    %1038 = vmatprep.subr.bf16.mxu0 0
    %1039 = vmatpush1.bf16.msra.mxu0 0
    %1040 = vmatprep.subr.bf16.mxu0 0
    %1041 = vmatpush1.bf16.msra.mxu0 0
    %1042 = vmatprep.subr.bf16.mxu0 0
    %1043 = vmatpush1.bf16.msra.mxu0 0
    %1044 = vmatprep.subr.bf16.mxu0 0
    %1045 = vmatpush1.bf16.msra.mxu0 0
    %1046 = vmatprep.subr.bf16.mxu0 0
    %1047 = vmatpush1.bf16.msra.mxu0 0
    %1048 = vmatprep.subr.bf16.mxu0 0
    %1049 = vmatpush1.bf16.msra.mxu0 0
    %1050 = vmatprep.subr.bf16.mxu0 0
    %1051 = vmatpush1.bf16.msra.mxu0 0
    %1052 = vmatprep.mubr.bf16.mxu0 0
    %1053 = vmatmul.mubr.bf16.gmra.mrb[0].mxu0 %v1018
    %v1054 = vpop.f32.mrb[0].mxu0
    %v1055 = vadd.f32 0.0, %v1054
    %v1056 = vpop.f32.mrb[0].mxu0
    %v1057 = vpop.f32.mrb[0].mxu0
    %v1058 = vadd.f32 0.0, %v1057
    %v1059 = vpop.f32.mrb[0].mxu0
    %1060 = vdwg.mxu0
    %v1061 = vadd.f32 %v1015, %v1055
    %v1062 = vadd.f32 %v1016, %v1058
    %v1063 = vxor.u32 %v1061, 2147483648
    %v1064 = vxor.u32 %v1062, 2147483648
    %v1065 = vmul.f32 %v1063, 1.442695
    %v1066 = vpow.pop %v1065
    %v1067 = vmul.f32 %v1064, 1.442695
    %v1068 = vpow.pop %v1067
    %v1069 = vadd.f32 %v1066, 1.0
    %v1070 = vadd.f32 %v1068, 1.0
    %v1071 = vrcp.pop %v1069
    %v1072 = vmul.f32 1.0, %v1071
    %v1073 = vrcp.pop %v1070
    %v1074 = vmul.f32 1.0, %v1073
    %v1075 = vtanh.pop %v1061
    %v1076 = vtanh.pop %v1062
    %v1077 = vmul.f32 %v1072, %v995
    %v1078 = vmul.f32 %v1074, %v996
    %1081 = vrot.lane.b32.xlu0 %v1075, 64
    %v1082 = vpop.permute.xlu0 %1081
    %1083 = vrot.lane.b32.xlu0 %v1076, 64
    %v1084 = vpop.permute.xlu0 %1083
    %v1087 = vmul.f32 %v1072, %v1082
    %v1088 = vmul.f32 %v1074, %v1084
    %1091 = vrot.lane.b32.xlu0 %v1087, 32
    %v1092 = vpop.permute.xlu0 %1091
    %1093 = vrot.lane.b32.xlu0 %v1088, 32
    %v1094 = vpop.permute.xlu0 %1093
    %v1097 = vadd.f32 %v1077, %v1092
    %v1098 = vadd.f32 %v1078, %v1094
    %v1099 = vtanh.pop %v1097
    %v1100 = vtanh.pop %v1098
    %1103 = vrot.lane.b32.xlu0 %v1099, 64
    %v1104 = vpop.permute.xlu0 %1103
    %1105 = vrot.lane.b32.xlu0 %v1100, 64
    %v1106 = vpop.permute.xlu0 %1105
    %v1109 = vmul.f32 %v1072, %v1104
    %v1110 = vmul.f32 %v1074, %v1106
    %v1111 = vpack.c.bf16 %v1110, %v1109
    %1113 = vrot.lane.b32.xlu0 %v1111, 32
    %v1114 = vpop.permute.xlu0 %1113
    %1116 = vst.msk [vmem:[#allocation2 + $0x38] sm:$0xff] %vm130, %v1114
    %v1117 = vunpack.c.l.b16 %v1111
    %v1118 = vunpack.c.h.b16 %v1111
    %v1119 = vpack.c.b16 %v1117, %v1117
    %v1120 = vpack.c.b16 %v1118, %v1118
    %1121 = vrot.lane.b32.xlu0 %v1119, 32
    %v1122 = vpop.permute.xlu0 %1121
    %1123 = vrot.lane.b32.xlu0 %v1120, 32
    %v1124 = vpop.permute.xlu0 %1123
    %vm1127 = vcmask 257024
    %1128 = vst.msk [vmem:[#allocation7] sm:$0xf] %vm1127, %v1122
    %1129 = vst.msk [vmem:[#allocation7 + $0x4] sm:$0xf] %vm1127, %v1124
    %1132 = vrot.lane.b32.xlu0 %v1097, 96
    %v1133 = vpop.permute.xlu0 %1132
    %1134 = vrot.lane.b32.xlu0 %v1098, 96
    %v1135 = vpop.permute.xlu0 %1134
    %1138 = vst.msk [vmem:[#allocation8] sm:$0xff] %vm130, %v1133
    %1139 = vst.msk [vmem:[#allocation8 + $0x8] sm:$0xff] %vm130, %v1135
    %v1140 = vld [vmem:[#allocation2] sm:$0xff]
    %v1141 = vld [vmem:[#allocation2 + $0x8] sm:$0xff]
    %v1142 = vld [vmem:[#allocation2 + $0x10] sm:$0xff]
    %v1143 = vld [vmem:[#allocation2 + $0x18] sm:$0xff]
    %v1144 = vld [vmem:[#allocation2 + $0x20] sm:$0xff]
    %v1145 = vld [vmem:[#allocation2 + $0x28] sm:$0xff]
    %v1146 = vld [vmem:[#allocation2 + $0x30] sm:$0xff]
    %v1147 = vld [vmem:[#allocation2 + $0x38] sm:$0xff]
    %v1148 = vld [vmem:[%s6] sm:$0xf]
    %v1149 = vld [vmem:[%s6 + $0x4] sm:$0xf]
    %v1150 = vld [vmem:[%s6 + $0x8] sm:$0xf]
    %v1151 = vld [vmem:[%s6 + $0xc] sm:$0xf]
    %v1152 = vld [vmem:[%s8] sm:$0x1]
    %v1154 = vlaneseq
    %v1155 = vshrl.u32 %v1154, 7
    %v1156 = vsub.s32 0, %v1155
    %v1157 = vrot.slane %v1152, %v1156
    %v1163 = vunpack.c.l.b16 %v1148
    %v1164 = vunpack.c.l.b16 %v1149
    %v1165 = vunpack.c.l.b16 %v1150
    %v1166 = vunpack.c.l.b16 %v1151
    %v1167 = vpack.c.b16 %v1164, %v1163
    %v1168 = vpack.c.b16 %v1166, %v1165
    %v1172 = vsel %vm130, %v1140, 0
    %v1175 = vsel %vm130, %v1141, 0
    %v1178 = vsel %vm130, %v1142, 0
    %v1181 = vsel %vm130, %v1143, 0
    %v1184 = vsel %vm130, %v1144, 0
    %v1187 = vsel %vm130, %v1145, 0
    %v1190 = vsel %vm130, %v1146, 0
    %v1193 = vsel %vm130, %v1147, 0
    %1195 = vmatprep.subr.bf16.mxu0 0
    %1196 = vmatpush1.bf16.msra.mxu0 %v1167
    %1197 = vmatprep.subr.bf16.mxu0 0
    %1198 = vmatpush1.bf16.msra.mxu0 %v1168
    %1199 = vmatprep.subr.bf16.mxu0 0
    %1200 = vmatpush1.bf16.msra.mxu0 0
    %1201 = vmatprep.subr.bf16.mxu0 0
    %1202 = vmatpush1.bf16.msra.mxu0 0
    %1203 = vmatprep.subr.bf16.mxu0 0
    %1204 = vmatpush1.bf16.msra.mxu0 0
    %1205 = vmatprep.subr.bf16.mxu0 0
    %1206 = vmatpush1.bf16.msra.mxu0 0
    %1207 = vmatprep.subr.bf16.mxu0 0
    %1208 = vmatpush1.bf16.msra.mxu0 0
    %1209 = vmatprep.subr.bf16.mxu0 0
    %1210 = vmatpush1.bf16.msra.mxu0 0
    %1211 = vmatprep.subr.bf16.mxu0 0
    %1212 = vmatpush1.bf16.msra.mxu0 0
    %1213 = vmatprep.subr.bf16.mxu0 0
    %1214 = vmatpush1.bf16.msra.mxu0 0
    %1215 = vmatprep.subr.bf16.mxu0 0
    %1216 = vmatpush1.bf16.msra.mxu0 0
    %1217 = vmatprep.subr.bf16.mxu0 0
    %1218 = vmatpush1.bf16.msra.mxu0 0
    %1219 = vmatprep.subr.bf16.mxu0 0
    %1220 = vmatpush1.bf16.msra.mxu0 0
    %1221 = vmatprep.subr.bf16.mxu0 0
    %1222 = vmatpush1.bf16.msra.mxu0 0
    %1223 = vmatprep.subr.bf16.mxu0 0
    %1224 = vmatpush1.bf16.msra.mxu0 0
    %1225 = vmatprep.subr.bf16.mxu0 0
    %1226 = vmatpush1.bf16.msra.mxu0 0
    %1227 = vmatprep.mubr.bf16.mxu0 0
    %1228 = vmatmul.mubr.bf16.gmra.mrb[0].mxu0 %v1172
    %v1229 = vpop.f32.mrb[0].mxu0
    %v1230 = vadd.f32 %v1157, %v1229
    %v1231 = vpop.f32.mrb[0].mxu0
    %v1232 = vpop.f32.mrb[0].mxu0
    %v1233 = vadd.f32 %v1157, %v1232
    %v1234 = vpop.f32.mrb[0].mxu0
    %1235 = vmatprep.mubr.bf16.mxu0 0
    %1236 = vmatmul.mubr.bf16.gmra.mrb[0].mxu0 %v1175
    %v1237 = vpop.f32.mrb[0].mxu0
    %v1238 = vadd.f32 %v1157, %v1237
    %v1239 = vpop.f32.mrb[0].mxu0
    %v1240 = vpop.f32.mrb[0].mxu0
    %v1241 = vadd.f32 %v1157, %v1240
    %v1242 = vpop.f32.mrb[0].mxu0
    %1243 = vmatprep.mubr.bf16.mxu0 0
    %1244 = vmatmul.mubr.bf16.gmra.mrb[0].mxu0 %v1178
    %v1245 = vpop.f32.mrb[0].mxu0
    %v1246 = vadd.f32 %v1157, %v1245
    %v1247 = vpop.f32.mrb[0].mxu0
    %v1248 = vpop.f32.mrb[0].mxu0
    %v1249 = vadd.f32 %v1157, %v1248
    %v1250 = vpop.f32.mrb[0].mxu0
    %1251 = vmatprep.mubr.bf16.mxu0 0
    %1252 = vmatmul.mubr.bf16.gmra.mrb[0].mxu0 %v1181
    %v1253 = vpop.f32.mrb[0].mxu0
    %v1254 = vadd.f32 %v1157, %v1253
    %v1255 = vpop.f32.mrb[0].mxu0
    %v1256 = vpop.f32.mrb[0].mxu0
    %v1257 = vadd.f32 %v1157, %v1256
    %v1258 = vpop.f32.mrb[0].mxu0
    %1259 = vmatprep.mubr.bf16.mxu0 0
    %1260 = vmatmul.mubr.bf16.gmra.mrb[0].mxu0 %v1184
    %v1261 = vpop.f32.mrb[0].mxu0
    %v1262 = vadd.f32 %v1157, %v1261
    %v1263 = vpop.f32.mrb[0].mxu0
    %v1264 = vpop.f32.mrb[0].mxu0
    %v1265 = vadd.f32 %v1157, %v1264
    %v1266 = vpop.f32.mrb[0].mxu0
    %1267 = vmatprep.mubr.bf16.mxu0 0
    %1268 = vmatmul.mubr.bf16.gmra.mrb[0].mxu0 %v1187
    %v1269 = vpop.f32.mrb[0].mxu0
    %v1270 = vadd.f32 %v1157, %v1269
    %v1271 = vpop.f32.mrb[0].mxu0
    %v1272 = vpop.f32.mrb[0].mxu0
    %v1273 = vadd.f32 %v1157, %v1272
    %v1274 = vpop.f32.mrb[0].mxu0
    %1275 = vmatprep.mubr.bf16.mxu0 0
    %1276 = vmatmul.mubr.bf16.gmra.mrb[0].mxu0 %v1190
    %v1277 = vpop.f32.mrb[0].mxu0
    %v1278 = vadd.f32 %v1157, %v1277
    %v1279 = vpop.f32.mrb[0].mxu0
    %v1280 = vpop.f32.mrb[0].mxu0
    %v1281 = vadd.f32 %v1157, %v1280
    %v1282 = vpop.f32.mrb[0].mxu0
    %1283 = vmatprep.mubr.bf16.mxu0 0
    %1284 = vmatmul.mubr.bf16.gmra.mrb[0].mxu0 %v1193
    %v1285 = vpop.f32.mrb[0].mxu0
    %v1286 = vadd.f32 %v1157, %v1285
    %v1287 = vpop.f32.mrb[0].mxu0
    %v1288 = vpop.f32.mrb[0].mxu0
    %v1289 = vadd.f32 %v1157, %v1288
    %v1290 = vpop.f32.mrb[0].mxu0
    %1291 = vdwg.mxu0
    %1292 = vst [vmem:[#allocation3] sm:$0xff] %v1230
    %1293 = vst [vmem:[#allocation3 + $0x8] sm:$0xff] %v1233
    %1294 = vst [vmem:[#allocation3 + $0x10] sm:$0xff] %v1238
    %1295 = vst [vmem:[#allocation3 + $0x18] sm:$0xff] %v1241
    %1296 = vst [vmem:[#allocation3 + $0x20] sm:$0xff] %v1246
    %1297 = vst [vmem:[#allocation3 + $0x28] sm:$0xff] %v1249
    %1298 = vst [vmem:[#allocation3 + $0x30] sm:$0xff] %v1254
    %1299 = vst [vmem:[#allocation3 + $0x38] sm:$0xff] %v1257
    %1300 = vst [vmem:[#allocation3 + $0x40] sm:$0xff] %v1262
    %1301 = vst [vmem:[#allocation3 + $0x48] sm:$0xff] %v1265
    %1302 = vst [vmem:[#allocation3 + $0x50] sm:$0xff] %v1270
    %1303 = vst [vmem:[#allocation3 + $0x58] sm:$0xff] %v1273
    %1304 = vst [vmem:[#allocation3 + $0x60] sm:$0xff] %v1278
    %1305 = vst [vmem:[#allocation3 + $0x68] sm:$0xff] %v1281
    %1306 = vst [vmem:[#allocation3 + $0x70] sm:$0xff] %v1286
    %1307 = vst [vmem:[#allocation3 + $0x78] sm:$0xff] %v1289
    %s1308 = scalar_lea.vmem %s1, 8
    %v1309 = vld [vmem:[%s1308] sm:$0xf]
    %v1310 = vld [vmem:[%s1308 + $0x4] sm:$0xf]
    %s1311 = scalar_lea.vmem %s2, 16
    %v1312 = vld [vmem:[%s1311] sm:$0xff]
    %v1313 = vld [vmem:[%s1311 + $0x8] sm:$0xff]
    %v1314 = vld [vmem:[#allocation4] sm:$0xf]
    %v1315 = vld [vmem:[#allocation4 + $0x4] sm:$0xf]
    %v1316 = vld [vmem:[#allocation4 + $0x8] sm:$0xf]
    %v1317 = vld [vmem:[#allocation4 + $0xc] sm:$0xf]
    %v1318 = vld [vmem:[#allocation3] sm:$0xff]
    %v1319 = vld [vmem:[#allocation3 + $0x8] sm:$0xff]
    %v1322 = vunpack.c.l.b16 %v1309
    %v1323 = vunpack.c.l.b16 %v1310
    %v1324 = vpack.c.b16 %v1323, %v1322
    %v1329 = vunpack.c.l.b16 %v1314
    %v1330 = vunpack.c.l.b16 %v1315
    %v1331 = vunpack.c.l.b16 %v1316
    %v1332 = vunpack.c.l.b16 %v1317
    %v1333 = vpack.c.b16 %v1330, %v1329
    %v1334 = vpack.c.b16 %v1332, %v1331
    %v1338 = vsel %vm130, %v1324, 0
    %1340 = vmatprep.subr.bf16.mxu0 0
    %1341 = vmatpush1.bf16.msra.mxu0 %v1333
    %1342 = vmatprep.subr.bf16.mxu0 0
    %1343 = vmatpush1.bf16.msra.mxu0 %v1334
    %1344 = vmatprep.subr.bf16.mxu0 0
    %1345 = vmatpush1.bf16.msra.mxu0 0
    %1346 = vmatprep.subr.bf16.mxu0 0
    %1347 = vmatpush1.bf16.msra.mxu0 0
    %1348 = vmatprep.subr.bf16.mxu0 0
    %1349 = vmatpush1.bf16.msra.mxu0 0
    %1350 = vmatprep.subr.bf16.mxu0 0
    %1351 = vmatpush1.bf16.msra.mxu0 0
    %1352 = vmatprep.subr.bf16.mxu0 0
    %1353 = vmatpush1.bf16.msra.mxu0 0
    %1354 = vmatprep.subr.bf16.mxu0 0
    %1355 = vmatpush1.bf16.msra.mxu0 0
    %1356 = vmatprep.subr.bf16.mxu0 0
    %1357 = vmatpush1.bf16.msra.mxu0 0
    %1358 = vmatprep.subr.bf16.mxu0 0
    %1359 = vmatpush1.bf16.msra.mxu0 0
    %1360 = vmatprep.subr.bf16.mxu0 0
    %1361 = vmatpush1.bf16.msra.mxu0 0
    %1362 = vmatprep.subr.bf16.mxu0 0
    %1363 = vmatpush1.bf16.msra.mxu0 0
    %1364 = vmatprep.subr.bf16.mxu0 0
    %1365 = vmatpush1.bf16.msra.mxu0 0
    %1366 = vmatprep.subr.bf16.mxu0 0
    %1367 = vmatpush1.bf16.msra.mxu0 0
    %1368 = vmatprep.subr.bf16.mxu0 0
    %1369 = vmatpush1.bf16.msra.mxu0 0
    %1370 = vmatprep.subr.bf16.mxu0 0
    %1371 = vmatpush1.bf16.msra.mxu0 0
    %1372 = vmatprep.mubr.bf16.mxu0 0
    %1373 = vmatmul.mubr.bf16.gmra.mrb[0].mxu0 %v1338
    %v1374 = vpop.f32.mrb[0].mxu0
    %v1375 = vadd.f32 0.0, %v1374
    %v1376 = vpop.f32.mrb[0].mxu0
    %v1377 = vpop.f32.mrb[0].mxu0
    %v1378 = vadd.f32 0.0, %v1377
    %v1379 = vpop.f32.mrb[0].mxu0
    %1380 = vdwg.mxu0
    %v1381 = vadd.f32 %v1318, %v1375
    %v1382 = vadd.f32 %v1319, %v1378
    %v1383 = vxor.u32 %v1381, 2147483648
    %v1384 = vxor.u32 %v1382, 2147483648
    %v1385 = vmul.f32 %v1383, 1.442695
    %v1386 = vpow.pop %v1385
    %v1387 = vmul.f32 %v1384, 1.442695
    %v1388 = vpow.pop %v1387
    %v1389 = vadd.f32 %v1386, 1.0
    %v1390 = vadd.f32 %v1388, 1.0
    %v1391 = vrcp.pop %v1389
    %v1392 = vmul.f32 1.0, %v1391
    %v1393 = vrcp.pop %v1390
    %v1394 = vmul.f32 1.0, %v1393
    %v1395 = vtanh.pop %v1381
    %v1396 = vtanh.pop %v1382
    %1399 = vrot.lane.b32.xlu0 %v1312, 32
    %v1400 = vpop.permute.xlu0 %1399
    %1401 = vrot.lane.b32.xlu0 %v1313, 32
    %v1402 = vpop.permute.xlu0 %1401
    %v1405 = vmul.f32 %v1392, %v1400
    %v1406 = vmul.f32 %v1394, %v1402
    %1409 = vrot.lane.b32.xlu0 %v1395, 64
    %v1410 = vpop.permute.xlu0 %1409
    %1411 = vrot.lane.b32.xlu0 %v1396, 64
    %v1412 = vpop.permute.xlu0 %1411
    %v1415 = vmul.f32 %v1392, %v1410
    %v1416 = vmul.f32 %v1394, %v1412
    %1419 = vrot.lane.b32.xlu0 %v1415, 32
    %v1420 = vpop.permute.xlu0 %1419
    %1421 = vrot.lane.b32.xlu0 %v1416, 32
    %v1422 = vpop.permute.xlu0 %1421
    %v1425 = vadd.f32 %v1405, %v1420
    %v1426 = vadd.f32 %v1406, %v1422
    %v1427 = vtanh.pop %v1425
    %v1428 = vtanh.pop %v1426
    %1431 = vrot.lane.b32.xlu0 %v1427, 64
    %v1432 = vpop.permute.xlu0 %1431
    %1433 = vrot.lane.b32.xlu0 %v1428, 64
    %v1434 = vpop.permute.xlu0 %1433
    %v1437 = vmul.f32 %v1392, %v1432
    %v1438 = vmul.f32 %v1394, %v1434
    %v1439 = vpack.c.bf16 %v1438, %v1437
    %v1440 = vld [vmem:[#allocation3 + $0x10] sm:$0xff]
    %v1441 = vld [vmem:[#allocation3 + $0x18] sm:$0xff]
    %1443 = vrot.lane.b32.xlu0 %v1439, 32
    %v1444 = vpop.permute.xlu0 %1443
    %v1446 = vsel %vm130, %v1444, 0
    %1448 = vmatprep.subr.bf16.mxu0 0
    %1449 = vmatpush1.bf16.msra.mxu0 %v1333
    %1450 = vmatprep.subr.bf16.mxu0 0
    %1451 = vmatpush1.bf16.msra.mxu0 %v1334
    %1452 = vmatprep.subr.bf16.mxu0 0
    %1453 = vmatpush1.bf16.msra.mxu0 0
    %1454 = vmatprep.subr.bf16.mxu0 0
    %1455 = vmatpush1.bf16.msra.mxu0 0
    %1456 = vmatprep.subr.bf16.mxu0 0
    %1457 = vmatpush1.bf16.msra.mxu0 0
    %1458 = vmatprep.subr.bf16.mxu0 0
    %1459 = vmatpush1.bf16.msra.mxu0 0
    %1460 = vmatprep.subr.bf16.mxu0 0
    %1461 = vmatpush1.bf16.msra.mxu0 0
    %1462 = vmatprep.subr.bf16.mxu0 0
    %1463 = vmatpush1.bf16.msra.mxu0 0
    %1464 = vmatprep.subr.bf16.mxu0 0
    %1465 = vmatpush1.bf16.msra.mxu0 0
    %1466 = vmatprep.subr.bf16.mxu0 0
    %1467 = vmatpush1.bf16.msra.mxu0 0
    %1468 = vmatprep.subr.bf16.mxu0 0
    %1469 = vmatpush1.bf16.msra.mxu0 0
    %1470 = vmatprep.subr.bf16.mxu0 0
    %1471 = vmatpush1.bf16.msra.mxu0 0
    %1472 = vmatprep.subr.bf16.mxu0 0
    %1473 = vmatpush1.bf16.msra.mxu0 0
    %1474 = vmatprep.subr.bf16.mxu0 0
    %1475 = vmatpush1.bf16.msra.mxu0 0
    %1476 = vmatprep.subr.bf16.mxu0 0
    %1477 = vmatpush1.bf16.msra.mxu0 0
    %1478 = vmatprep.subr.bf16.mxu0 0
    %1479 = vmatpush1.bf16.msra.mxu0 0
    %1480 = vmatprep.mubr.bf16.mxu0 0
    %1481 = vmatmul.mubr.bf16.gmra.mrb[0].mxu0 %v1446
    %v1482 = vpop.f32.mrb[0].mxu0
    %v1483 = vadd.f32 0.0, %v1482
    %v1484 = vpop.f32.mrb[0].mxu0
    %v1485 = vpop.f32.mrb[0].mxu0
    %v1486 = vadd.f32 0.0, %v1485
    %v1487 = vpop.f32.mrb[0].mxu0
    %1488 = vdwg.mxu0
    %v1489 = vadd.f32 %v1440, %v1483
    %v1490 = vadd.f32 %v1441, %v1486
    %v1491 = vxor.u32 %v1489, 2147483648
    %v1492 = vxor.u32 %v1490, 2147483648
    %v1493 = vmul.f32 %v1491, 1.442695
    %v1494 = vpow.pop %v1493
    %v1495 = vmul.f32 %v1492, 1.442695
    %v1496 = vpow.pop %v1495
    %v1497 = vadd.f32 %v1494, 1.0
    %v1498 = vadd.f32 %v1496, 1.0
    %v1499 = vrcp.pop %v1497
    %v1500 = vmul.f32 1.0, %v1499
    %v1501 = vrcp.pop %v1498
    %v1502 = vmul.f32 1.0, %v1501
    %v1503 = vtanh.pop %v1489
    %v1504 = vtanh.pop %v1490
    %v1505 = vmul.f32 %v1500, %v1425
    %v1506 = vmul.f32 %v1502, %v1426
    %1509 = vrot.lane.b32.xlu0 %v1503, 64
    %v1510 = vpop.permute.xlu0 %1509
    %1511 = vrot.lane.b32.xlu0 %v1504, 64
    %v1512 = vpop.permute.xlu0 %1511
    %v1515 = vmul.f32 %v1500, %v1510
    %v1516 = vmul.f32 %v1502, %v1512
    %1519 = vrot.lane.b32.xlu0 %v1515, 32
    %v1520 = vpop.permute.xlu0 %1519
    %1521 = vrot.lane.b32.xlu0 %v1516, 32
    %v1522 = vpop.permute.xlu0 %1521
    %v1525 = vadd.f32 %v1505, %v1520
    %v1526 = vadd.f32 %v1506, %v1522
    %v1527 = vtanh.pop %v1525
    %v1528 = vtanh.pop %v1526
    %1531 = vrot.lane.b32.xlu0 %v1527, 64
    %v1532 = vpop.permute.xlu0 %1531
    %1533 = vrot.lane.b32.xlu0 %v1528, 64
    %v1534 = vpop.permute.xlu0 %1533
    %v1537 = vmul.f32 %v1500, %v1532
    %v1538 = vmul.f32 %v1502, %v1534
    %v1539 = vpack.c.bf16 %v1538, %v1537
    %v1540 = vld [vmem:[#allocation3 + $0x20] sm:$0xff]
    %v1541 = vld [vmem:[#allocation3 + $0x28] sm:$0xff]
    %1543 = vrot.lane.b32.xlu0 %v1539, 32
    %v1544 = vpop.permute.xlu0 %1543
    %v1546 = vsel %vm130, %v1544, 0
    %1548 = vmatprep.subr.bf16.mxu0 0
    %1549 = vmatpush1.bf16.msra.mxu0 %v1333
    %1550 = vmatprep.subr.bf16.mxu0 0
    %1551 = vmatpush1.bf16.msra.mxu0 %v1334
    %1552 = vmatprep.subr.bf16.mxu0 0
    %1553 = vmatpush1.bf16.msra.mxu0 0
    %1554 = vmatprep.subr.bf16.mxu0 0
    %1555 = vmatpush1.bf16.msra.mxu0 0
    %1556 = vmatprep.subr.bf16.mxu0 0
    %1557 = vmatpush1.bf16.msra.mxu0 0
    %1558 = vmatprep.subr.bf16.mxu0 0
    %1559 = vmatpush1.bf16.msra.mxu0 0
    %1560 = vmatprep.subr.bf16.mxu0 0
    %1561 = vmatpush1.bf16.msra.mxu0 0
    %1562 = vmatprep.subr.bf16.mxu0 0
    %1563 = vmatpush1.bf16.msra.mxu0 0
    %1564 = vmatprep.subr.bf16.mxu0 0
    %1565 = vmatpush1.bf16.msra.mxu0 0
    %1566 = vmatprep.subr.bf16.mxu0 0
    %1567 = vmatpush1.bf16.msra.mxu0 0
    %1568 = vmatprep.subr.bf16.mxu0 0
    %1569 = vmatpush1.bf16.msra.mxu0 0
    %1570 = vmatprep.subr.bf16.mxu0 0
    %1571 = vmatpush1.bf16.msra.mxu0 0
    %1572 = vmatprep.subr.bf16.mxu0 0
    %1573 = vmatpush1.bf16.msra.mxu0 0
    %1574 = vmatprep.subr.bf16.mxu0 0
    %1575 = vmatpush1.bf16.msra.mxu0 0
    %1576 = vmatprep.subr.bf16.mxu0 0
    %1577 = vmatpush1.bf16.msra.mxu0 0
    %1578 = vmatprep.subr.bf16.mxu0 0
    %1579 = vmatpush1.bf16.msra.mxu0 0
    %1580 = vmatprep.mubr.bf16.mxu0 0
    %1581 = vmatmul.mubr.bf16.gmra.mrb[0].mxu0 %v1546
    %v1582 = vpop.f32.mrb[0].mxu0
    %v1583 = vadd.f32 0.0, %v1582
    %v1584 = vpop.f32.mrb[0].mxu0
    %v1585 = vpop.f32.mrb[0].mxu0
    %v1586 = vadd.f32 0.0, %v1585
    %v1587 = vpop.f32.mrb[0].mxu0
    %1588 = vdwg.mxu0
    %v1589 = vadd.f32 %v1540, %v1583
    %v1590 = vadd.f32 %v1541, %v1586
    %v1591 = vxor.u32 %v1589, 2147483648
    %v1592 = vxor.u32 %v1590, 2147483648
    %v1593 = vmul.f32 %v1591, 1.442695
    %v1594 = vpow.pop %v1593
    %v1595 = vmul.f32 %v1592, 1.442695
    %v1596 = vpow.pop %v1595
    %v1597 = vadd.f32 %v1594, 1.0
    %v1598 = vadd.f32 %v1596, 1.0
    %v1599 = vrcp.pop %v1597
    %v1600 = vmul.f32 1.0, %v1599
    %v1601 = vrcp.pop %v1598
    %v1602 = vmul.f32 1.0, %v1601
    %v1603 = vtanh.pop %v1589
    %v1604 = vtanh.pop %v1590
    %v1605 = vmul.f32 %v1600, %v1525
    %v1606 = vmul.f32 %v1602, %v1526
    %1609 = vrot.lane.b32.xlu0 %v1603, 64
    %v1610 = vpop.permute.xlu0 %1609
    %1611 = vrot.lane.b32.xlu0 %v1604, 64
    %v1612 = vpop.permute.xlu0 %1611
    %v1615 = vmul.f32 %v1600, %v1610
    %v1616 = vmul.f32 %v1602, %v1612
    %1619 = vrot.lane.b32.xlu0 %v1615, 32
    %v1620 = vpop.permute.xlu0 %1619
    %1621 = vrot.lane.b32.xlu0 %v1616, 32
    %v1622 = vpop.permute.xlu0 %1621
    %v1625 = vadd.f32 %v1605, %v1620
    %v1626 = vadd.f32 %v1606, %v1622
    %v1627 = vtanh.pop %v1625
    %v1628 = vtanh.pop %v1626
    %1631 = vrot.lane.b32.xlu0 %v1627, 64
    %v1632 = vpop.permute.xlu0 %1631
    %1633 = vrot.lane.b32.xlu0 %v1628, 64
    %v1634 = vpop.permute.xlu0 %1633
    %v1637 = vmul.f32 %v1600, %v1632
    %v1638 = vmul.f32 %v1602, %v1634
    %v1639 = vpack.c.bf16 %v1638, %v1637
    %v1640 = vld [vmem:[#allocation3 + $0x30] sm:$0xff]
    %v1641 = vld [vmem:[#allocation3 + $0x38] sm:$0xff]
    %1643 = vrot.lane.b32.xlu0 %v1639, 32
    %v1644 = vpop.permute.xlu0 %1643
    %v1646 = vsel %vm130, %v1644, 0
    %1648 = vmatprep.subr.bf16.mxu0 0
    %1649 = vmatpush1.bf16.msra.mxu0 %v1333
    %1650 = vmatprep.subr.bf16.mxu0 0
    %1651 = vmatpush1.bf16.msra.mxu0 %v1334
    %1652 = vmatprep.subr.bf16.mxu0 0
    %1653 = vmatpush1.bf16.msra.mxu0 0
    %1654 = vmatprep.subr.bf16.mxu0 0
    %1655 = vmatpush1.bf16.msra.mxu0 0
    %1656 = vmatprep.subr.bf16.mxu0 0
    %1657 = vmatpush1.bf16.msra.mxu0 0
    %1658 = vmatprep.subr.bf16.mxu0 0
    %1659 = vmatpush1.bf16.msra.mxu0 0
    %1660 = vmatprep.subr.bf16.mxu0 0
    %1661 = vmatpush1.bf16.msra.mxu0 0
    %1662 = vmatprep.subr.bf16.mxu0 0
    %1663 = vmatpush1.bf16.msra.mxu0 0
    %1664 = vmatprep.subr.bf16.mxu0 0
    %1665 = vmatpush1.bf16.msra.mxu0 0
    %1666 = vmatprep.subr.bf16.mxu0 0
    %1667 = vmatpush1.bf16.msra.mxu0 0
    %1668 = vmatprep.subr.bf16.mxu0 0
    %1669 = vmatpush1.bf16.msra.mxu0 0
    %1670 = vmatprep.subr.bf16.mxu0 0
    %1671 = vmatpush1.bf16.msra.mxu0 0
    %1672 = vmatprep.subr.bf16.mxu0 0
    %1673 = vmatpush1.bf16.msra.mxu0 0
    %1674 = vmatprep.subr.bf16.mxu0 0
    %1675 = vmatpush1.bf16.msra.mxu0 0
    %1676 = vmatprep.subr.bf16.mxu0 0
    %1677 = vmatpush1.bf16.msra.mxu0 0
    %1678 = vmatprep.subr.bf16.mxu0 0
    %1679 = vmatpush1.bf16.msra.mxu0 0
    %1680 = vmatprep.mubr.bf16.mxu0 0
    %1681 = vmatmul.mubr.bf16.gmra.mrb[0].mxu0 %v1646
    %v1682 = vpop.f32.mrb[0].mxu0
    %v1683 = vadd.f32 0.0, %v1682
    %v1684 = vpop.f32.mrb[0].mxu0
    %v1685 = vpop.f32.mrb[0].mxu0
    %v1686 = vadd.f32 0.0, %v1685
    %v1687 = vpop.f32.mrb[0].mxu0
    %1688 = vdwg.mxu0
    %v1689 = vadd.f32 %v1640, %v1683
    %v1690 = vadd.f32 %v1641, %v1686
    %v1691 = vxor.u32 %v1689, 2147483648
    %v1692 = vxor.u32 %v1690, 2147483648
    %v1693 = vmul.f32 %v1691, 1.442695
    %v1694 = vpow.pop %v1693
    %v1695 = vmul.f32 %v1692, 1.442695
    %v1696 = vpow.pop %v1695
    %v1697 = vadd.f32 %v1694, 1.0
    %v1698 = vadd.f32 %v1696, 1.0
    %v1699 = vrcp.pop %v1697
    %v1700 = vmul.f32 1.0, %v1699
    %v1701 = vrcp.pop %v1698
    %v1702 = vmul.f32 1.0, %v1701
    %v1703 = vtanh.pop %v1689
    %v1704 = vtanh.pop %v1690
    %v1705 = vmul.f32 %v1700, %v1625
    %v1706 = vmul.f32 %v1702, %v1626
    %1709 = vrot.lane.b32.xlu0 %v1703, 64
    %v1710 = vpop.permute.xlu0 %1709
    %1711 = vrot.lane.b32.xlu0 %v1704, 64
    %v1712 = vpop.permute.xlu0 %1711
    %v1715 = vmul.f32 %v1700, %v1710
    %v1716 = vmul.f32 %v1702, %v1712
    %1719 = vrot.lane.b32.xlu0 %v1715, 32
    %v1720 = vpop.permute.xlu0 %1719
    %1721 = vrot.lane.b32.xlu0 %v1716, 32
    %v1722 = vpop.permute.xlu0 %1721
    %v1725 = vadd.f32 %v1705, %v1720
    %v1726 = vadd.f32 %v1706, %v1722
    %v1727 = vtanh.pop %v1725
    %v1728 = vtanh.pop %v1726
    %1731 = vrot.lane.b32.xlu0 %v1727, 64
    %v1732 = vpop.permute.xlu0 %1731
    %1733 = vrot.lane.b32.xlu0 %v1728, 64
    %v1734 = vpop.permute.xlu0 %1733
    %v1737 = vmul.f32 %v1700, %v1732
    %v1738 = vmul.f32 %v1702, %v1734
    %v1739 = vpack.c.bf16 %v1738, %v1737
    %v1740 = vld [vmem:[#allocation3 + $0x40] sm:$0xff]
    %v1741 = vld [vmem:[#allocation3 + $0x48] sm:$0xff]
    %1743 = vrot.lane.b32.xlu0 %v1739, 32
    %v1744 = vpop.permute.xlu0 %1743
    %v1746 = vsel %vm130, %v1744, 0
    %1748 = vmatprep.subr.bf16.mxu0 0
    %1749 = vmatpush1.bf16.msra.mxu0 %v1333
    %1750 = vmatprep.subr.bf16.mxu0 0
    %1751 = vmatpush1.bf16.msra.mxu0 %v1334
    %1752 = vmatprep.subr.bf16.mxu0 0
    %1753 = vmatpush1.bf16.msra.mxu0 0
    %1754 = vmatprep.subr.bf16.mxu0 0
    %1755 = vmatpush1.bf16.msra.mxu0 0
    %1756 = vmatprep.subr.bf16.mxu0 0
    %1757 = vmatpush1.bf16.msra.mxu0 0
    %1758 = vmatprep.subr.bf16.mxu0 0
    %1759 = vmatpush1.bf16.msra.mxu0 0
    %1760 = vmatprep.subr.bf16.mxu0 0
    %1761 = vmatpush1.bf16.msra.mxu0 0
    %1762 = vmatprep.subr.bf16.mxu0 0
    %1763 = vmatpush1.bf16.msra.mxu0 0
    %1764 = vmatprep.subr.bf16.mxu0 0
    %1765 = vmatpush1.bf16.msra.mxu0 0
    %1766 = vmatprep.subr.bf16.mxu0 0
    %1767 = vmatpush1.bf16.msra.mxu0 0
    %1768 = vmatprep.subr.bf16.mxu0 0
    %1769 = vmatpush1.bf16.msra.mxu0 0
    %1770 = vmatprep.subr.bf16.mxu0 0
    %1771 = vmatpush1.bf16.msra.mxu0 0
    %1772 = vmatprep.subr.bf16.mxu0 0
    %1773 = vmatpush1.bf16.msra.mxu0 0
    %1774 = vmatprep.subr.bf16.mxu0 0
    %1775 = vmatpush1.bf16.msra.mxu0 0
    %1776 = vmatprep.subr.bf16.mxu0 0
    %1777 = vmatpush1.bf16.msra.mxu0 0
    %1778 = vmatprep.subr.bf16.mxu0 0
    %1779 = vmatpush1.bf16.msra.mxu0 0
    %1780 = vmatprep.mubr.bf16.mxu0 0
    %1781 = vmatmul.mubr.bf16.gmra.mrb[0].mxu0 %v1746
    %v1782 = vpop.f32.mrb[0].mxu0
    %v1783 = vadd.f32 0.0, %v1782
    %v1784 = vpop.f32.mrb[0].mxu0
    %v1785 = vpop.f32.mrb[0].mxu0
    %v1786 = vadd.f32 0.0, %v1785
    %v1787 = vpop.f32.mrb[0].mxu0
    %1788 = vdwg.mxu0
    %v1789 = vadd.f32 %v1740, %v1783
    %v1790 = vadd.f32 %v1741, %v1786
    %v1791 = vxor.u32 %v1789, 2147483648
    %v1792 = vxor.u32 %v1790, 2147483648
    %v1793 = vmul.f32 %v1791, 1.442695
    %v1794 = vpow.pop %v1793
    %v1795 = vmul.f32 %v1792, 1.442695
    %v1796 = vpow.pop %v1795
    %v1797 = vadd.f32 %v1794, 1.0
    %v1798 = vadd.f32 %v1796, 1.0
    %v1799 = vrcp.pop %v1797
    %v1800 = vmul.f32 1.0, %v1799
    %v1801 = vrcp.pop %v1798
    %v1802 = vmul.f32 1.0, %v1801
    %v1803 = vtanh.pop %v1789
    %v1804 = vtanh.pop %v1790
    %v1805 = vmul.f32 %v1800, %v1725
    %v1806 = vmul.f32 %v1802, %v1726
    %1809 = vrot.lane.b32.xlu0 %v1803, 64
    %v1810 = vpop.permute.xlu0 %1809
    %1811 = vrot.lane.b32.xlu0 %v1804, 64
    %v1812 = vpop.permute.xlu0 %1811
    %v1815 = vmul.f32 %v1800, %v1810
    %v1816 = vmul.f32 %v1802, %v1812
    %1819 = vrot.lane.b32.xlu0 %v1815, 32
    %v1820 = vpop.permute.xlu0 %1819
    %1821 = vrot.lane.b32.xlu0 %v1816, 32
    %v1822 = vpop.permute.xlu0 %1821
    %v1825 = vadd.f32 %v1805, %v1820
    %v1826 = vadd.f32 %v1806, %v1822
    %v1827 = vtanh.pop %v1825
    %v1828 = vtanh.pop %v1826
    %1831 = vrot.lane.b32.xlu0 %v1827, 64
    %v1832 = vpop.permute.xlu0 %1831
    %1833 = vrot.lane.b32.xlu0 %v1828, 64
    %v1834 = vpop.permute.xlu0 %1833
    %v1837 = vmul.f32 %v1800, %v1832
    %v1838 = vmul.f32 %v1802, %v1834
    %v1839 = vpack.c.bf16 %v1838, %v1837
    %v1840 = vld [vmem:[#allocation3 + $0x50] sm:$0xff]
    %v1841 = vld [vmem:[#allocation3 + $0x58] sm:$0xff]
    %1843 = vrot.lane.b32.xlu0 %v1839, 32
    %v1844 = vpop.permute.xlu0 %1843
    %v1846 = vsel %vm130, %v1844, 0
    %1848 = vmatprep.subr.bf16.mxu0 0
    %1849 = vmatpush1.bf16.msra.mxu0 %v1333
    %1850 = vmatprep.subr.bf16.mxu0 0
    %1851 = vmatpush1.bf16.msra.mxu0 %v1334
    %1852 = vmatprep.subr.bf16.mxu0 0
    %1853 = vmatpush1.bf16.msra.mxu0 0
    %1854 = vmatprep.subr.bf16.mxu0 0
    %1855 = vmatpush1.bf16.msra.mxu0 0
    %1856 = vmatprep.subr.bf16.mxu0 0
    %1857 = vmatpush1.bf16.msra.mxu0 0
    %1858 = vmatprep.subr.bf16.mxu0 0
    %1859 = vmatpush1.bf16.msra.mxu0 0
    %1860 = vmatprep.subr.bf16.mxu0 0
    %1861 = vmatpush1.bf16.msra.mxu0 0
    %1862 = vmatprep.subr.bf16.mxu0 0
    %1863 = vmatpush1.bf16.msra.mxu0 0
    %1864 = vmatprep.subr.bf16.mxu0 0
    %1865 = vmatpush1.bf16.msra.mxu0 0
    %1866 = vmatprep.subr.bf16.mxu0 0
    %1867 = vmatpush1.bf16.msra.mxu0 0
    %1868 = vmatprep.subr.bf16.mxu0 0
    %1869 = vmatpush1.bf16.msra.mxu0 0
    %1870 = vmatprep.subr.bf16.mxu0 0
    %1871 = vmatpush1.bf16.msra.mxu0 0
    %1872 = vmatprep.subr.bf16.mxu0 0
    %1873 = vmatpush1.bf16.msra.mxu0 0
    %1874 = vmatprep.subr.bf16.mxu0 0
    %1875 = vmatpush1.bf16.msra.mxu0 0
    %1876 = vmatprep.subr.bf16.mxu0 0
    %1877 = vmatpush1.bf16.msra.mxu0 0
    %1878 = vmatprep.subr.bf16.mxu0 0
    %1879 = vmatpush1.bf16.msra.mxu0 0
    %1880 = vmatprep.mubr.bf16.mxu0 0
    %1881 = vmatmul.mubr.bf16.gmra.mrb[0].mxu0 %v1846
    %v1882 = vpop.f32.mrb[0].mxu0
    %v1883 = vadd.f32 0.0, %v1882
    %v1884 = vpop.f32.mrb[0].mxu0
    %v1885 = vpop.f32.mrb[0].mxu0
    %v1886 = vadd.f32 0.0, %v1885
    %v1887 = vpop.f32.mrb[0].mxu0
    %1888 = vdwg.mxu0
    %v1889 = vadd.f32 %v1840, %v1883
    %v1890 = vadd.f32 %v1841, %v1886
    %v1891 = vxor.u32 %v1889, 2147483648
    %v1892 = vxor.u32 %v1890, 2147483648
    %v1893 = vmul.f32 %v1891, 1.442695
    %v1894 = vpow.pop %v1893
    %v1895 = vmul.f32 %v1892, 1.442695
    %v1896 = vpow.pop %v1895
    %v1897 = vadd.f32 %v1894, 1.0
    %v1898 = vadd.f32 %v1896, 1.0
    %v1899 = vrcp.pop %v1897
    %v1900 = vmul.f32 1.0, %v1899
    %v1901 = vrcp.pop %v1898
    %v1902 = vmul.f32 1.0, %v1901
    %v1903 = vtanh.pop %v1889
    %v1904 = vtanh.pop %v1890
    %v1905 = vmul.f32 %v1900, %v1825
    %v1906 = vmul.f32 %v1902, %v1826
    %1909 = vrot.lane.b32.xlu0 %v1903, 64
    %v1910 = vpop.permute.xlu0 %1909
    %1911 = vrot.lane.b32.xlu0 %v1904, 64
    %v1912 = vpop.permute.xlu0 %1911
    %v1915 = vmul.f32 %v1900, %v1910
    %v1916 = vmul.f32 %v1902, %v1912
    %1919 = vrot.lane.b32.xlu0 %v1915, 32
    %v1920 = vpop.permute.xlu0 %1919
    %1921 = vrot.lane.b32.xlu0 %v1916, 32
    %v1922 = vpop.permute.xlu0 %1921
    %v1925 = vadd.f32 %v1905, %v1920
    %v1926 = vadd.f32 %v1906, %v1922
    %v1927 = vtanh.pop %v1925
    %v1928 = vtanh.pop %v1926
    %1931 = vrot.lane.b32.xlu0 %v1927, 64
    %v1932 = vpop.permute.xlu0 %1931
    %1933 = vrot.lane.b32.xlu0 %v1928, 64
    %v1934 = vpop.permute.xlu0 %1933
    %v1937 = vmul.f32 %v1900, %v1932
    %v1938 = vmul.f32 %v1902, %v1934
    %v1939 = vpack.c.bf16 %v1938, %v1937
    %v1940 = vld [vmem:[#allocation3 + $0x60] sm:$0xff]
    %v1941 = vld [vmem:[#allocation3 + $0x68] sm:$0xff]
    %1943 = vrot.lane.b32.xlu0 %v1939, 32
    %v1944 = vpop.permute.xlu0 %1943
    %v1946 = vsel %vm130, %v1944, 0
    %1948 = vmatprep.subr.bf16.mxu0 0
    %1949 = vmatpush1.bf16.msra.mxu0 %v1333
    %1950 = vmatprep.subr.bf16.mxu0 0
    %1951 = vmatpush1.bf16.msra.mxu0 %v1334
    %1952 = vmatprep.subr.bf16.mxu0 0
    %1953 = vmatpush1.bf16.msra.mxu0 0
    %1954 = vmatprep.subr.bf16.mxu0 0
    %1955 = vmatpush1.bf16.msra.mxu0 0
    %1956 = vmatprep.subr.bf16.mxu0 0
    %1957 = vmatpush1.bf16.msra.mxu0 0
    %1958 = vmatprep.subr.bf16.mxu0 0
    %1959 = vmatpush1.bf16.msra.mxu0 0
    %1960 = vmatprep.subr.bf16.mxu0 0
    %1961 = vmatpush1.bf16.msra.mxu0 0
    %1962 = vmatprep.subr.bf16.mxu0 0
    %1963 = vmatpush1.bf16.msra.mxu0 0
    %1964 = vmatprep.subr.bf16.mxu0 0
    %1965 = vmatpush1.bf16.msra.mxu0 0
    %1966 = vmatprep.subr.bf16.mxu0 0
    %1967 = vmatpush1.bf16.msra.mxu0 0
    %1968 = vmatprep.subr.bf16.mxu0 0
    %1969 = vmatpush1.bf16.msra.mxu0 0
    %1970 = vmatprep.subr.bf16.mxu0 0
    %1971 = vmatpush1.bf16.msra.mxu0 0
    %1972 = vmatprep.subr.bf16.mxu0 0
    %1973 = vmatpush1.bf16.msra.mxu0 0
    %1974 = vmatprep.subr.bf16.mxu0 0
    %1975 = vmatpush1.bf16.msra.mxu0 0
    %1976 = vmatprep.subr.bf16.mxu0 0
    %1977 = vmatpush1.bf16.msra.mxu0 0
    %1978 = vmatprep.subr.bf16.mxu0 0
    %1979 = vmatpush1.bf16.msra.mxu0 0
    %1980 = vmatprep.mubr.bf16.mxu0 0
    %1981 = vmatmul.mubr.bf16.gmra.mrb[0].mxu0 %v1946
    %v1982 = vpop.f32.mrb[0].mxu0
    %v1983 = vadd.f32 0.0, %v1982
    %v1984 = vpop.f32.mrb[0].mxu0
    %v1985 = vpop.f32.mrb[0].mxu0
    %v1986 = vadd.f32 0.0, %v1985
    %v1987 = vpop.f32.mrb[0].mxu0
    %1988 = vdwg.mxu0
    %v1989 = vadd.f32 %v1940, %v1983
    %v1990 = vadd.f32 %v1941, %v1986
    %v1991 = vxor.u32 %v1989, 2147483648
    %v1992 = vxor.u32 %v1990, 2147483648
    %v1993 = vmul.f32 %v1991, 1.442695
    %v1994 = vpow.pop %v1993
    %v1995 = vmul.f32 %v1992, 1.442695
    %v1996 = vpow.pop %v1995
    %v1997 = vadd.f32 %v1994, 1.0
    %v1998 = vadd.f32 %v1996, 1.0
    %v1999 = vrcp.pop %v1997
    %v2000 = vmul.f32 1.0, %v1999
    %v2001 = vrcp.pop %v1998
    %v2002 = vmul.f32 1.0, %v2001
    %v2003 = vtanh.pop %v1989
    %v2004 = vtanh.pop %v1990
    %v2005 = vmul.f32 %v2000, %v1925
    %v2006 = vmul.f32 %v2002, %v1926
    %2009 = vrot.lane.b32.xlu0 %v2003, 64
    %v2010 = vpop.permute.xlu0 %2009
    %2011 = vrot.lane.b32.xlu0 %v2004, 64
    %v2012 = vpop.permute.xlu0 %2011
    %v2015 = vmul.f32 %v2000, %v2010
    %v2016 = vmul.f32 %v2002, %v2012
    %2019 = vrot.lane.b32.xlu0 %v2015, 32
    %v2020 = vpop.permute.xlu0 %2019
    %2021 = vrot.lane.b32.xlu0 %v2016, 32
    %v2022 = vpop.permute.xlu0 %2021
    %v2025 = vadd.f32 %v2005, %v2020
    %v2026 = vadd.f32 %v2006, %v2022
    %v2027 = vtanh.pop %v2025
    %v2028 = vtanh.pop %v2026
    %2031 = vrot.lane.b32.xlu0 %v2027, 64
    %v2032 = vpop.permute.xlu0 %2031
    %2033 = vrot.lane.b32.xlu0 %v2028, 64
    %v2034 = vpop.permute.xlu0 %2033
    %v2037 = vmul.f32 %v2000, %v2032
    %v2038 = vmul.f32 %v2002, %v2034
    %v2039 = vpack.c.bf16 %v2038, %v2037
    %v2040 = vld [vmem:[#allocation3 + $0x70] sm:$0xff]
    %v2041 = vld [vmem:[#allocation3 + $0x78] sm:$0xff]
    %2043 = vrot.lane.b32.xlu0 %v2039, 32
    %v2044 = vpop.permute.xlu0 %2043
    %v2046 = vsel %vm130, %v2044, 0
    %2048 = vmatprep.subr.bf16.mxu0 0
    %2049 = vmatpush1.bf16.msra.mxu0 %v1333
    %2050 = vmatprep.subr.bf16.mxu0 0
    %2051 = vmatpush1.bf16.msra.mxu0 %v1334
    %2052 = vmatprep.subr.bf16.mxu0 0
    %2053 = vmatpush1.bf16.msra.mxu0 0
    %2054 = vmatprep.subr.bf16.mxu0 0
    %2055 = vmatpush1.bf16.msra.mxu0 0
    %2056 = vmatprep.subr.bf16.mxu0 0
    %2057 = vmatpush1.bf16.msra.mxu0 0
    %2058 = vmatprep.subr.bf16.mxu0 0
    %2059 = vmatpush1.bf16.msra.mxu0 0
    %2060 = vmatprep.subr.bf16.mxu0 0
    %2061 = vmatpush1.bf16.msra.mxu0 0
    %2062 = vmatprep.subr.bf16.mxu0 0
    %2063 = vmatpush1.bf16.msra.mxu0 0
    %2064 = vmatprep.subr.bf16.mxu0 0
    %2065 = vmatpush1.bf16.msra.mxu0 0
    %2066 = vmatprep.subr.bf16.mxu0 0
    %2067 = vmatpush1.bf16.msra.mxu0 0
    %2068 = vmatprep.subr.bf16.mxu0 0
    %2069 = vmatpush1.bf16.msra.mxu0 0
    %2070 = vmatprep.subr.bf16.mxu0 0
    %2071 = vmatpush1.bf16.msra.mxu0 0
    %2072 = vmatprep.subr.bf16.mxu0 0
    %2073 = vmatpush1.bf16.msra.mxu0 0
    %2074 = vmatprep.subr.bf16.mxu0 0
    %2075 = vmatpush1.bf16.msra.mxu0 0
    %2076 = vmatprep.subr.bf16.mxu0 0
    %2077 = vmatpush1.bf16.msra.mxu0 0
    %2078 = vmatprep.subr.bf16.mxu0 0
    %2079 = vmatpush1.bf16.msra.mxu0 0
    %2080 = vmatprep.mubr.bf16.mxu0 0
    %2081 = vmatmul.mubr.bf16.gmra.mrb[0].mxu0 %v2046
    %v2082 = vpop.f32.mrb[0].mxu0
    %v2083 = vadd.f32 0.0, %v2082
    %v2084 = vpop.f32.mrb[0].mxu0
    %v2085 = vpop.f32.mrb[0].mxu0
    %v2086 = vadd.f32 0.0, %v2085
    %v2087 = vpop.f32.mrb[0].mxu0
    %2088 = vdwg.mxu0
    %v2089 = vadd.f32 %v2040, %v2083
    %v2090 = vadd.f32 %v2041, %v2086
    %v2091 = vxor.u32 %v2089, 2147483648
    %v2092 = vxor.u32 %v2090, 2147483648
    %v2093 = vmul.f32 %v2091, 1.442695
    %v2094 = vpow.pop %v2093
    %v2095 = vmul.f32 %v2092, 1.442695
    %v2096 = vpow.pop %v2095
    %v2097 = vadd.f32 %v2094, 1.0
    %v2098 = vadd.f32 %v2096, 1.0
    %v2099 = vrcp.pop %v2097
    %v2100 = vmul.f32 1.0, %v2099
    %v2101 = vrcp.pop %v2098
    %v2102 = vmul.f32 1.0, %v2101
    %v2103 = vtanh.pop %v2089
    %v2104 = vtanh.pop %v2090
    %v2105 = vmul.f32 %v2100, %v2025
    %v2106 = vmul.f32 %v2102, %v2026
    %2109 = vrot.lane.b32.xlu0 %v2103, 64
    %v2110 = vpop.permute.xlu0 %2109
    %2111 = vrot.lane.b32.xlu0 %v2104, 64
    %v2112 = vpop.permute.xlu0 %2111
    %v2115 = vmul.f32 %v2100, %v2110
    %v2116 = vmul.f32 %v2102, %v2112
    %2119 = vrot.lane.b32.xlu0 %v2115, 32
    %v2120 = vpop.permute.xlu0 %2119
    %2121 = vrot.lane.b32.xlu0 %v2116, 32
    %v2122 = vpop.permute.xlu0 %2121
    %v2125 = vadd.f32 %v2105, %v2120
    %v2126 = vadd.f32 %v2106, %v2122
    %v2127 = vtanh.pop %v2125
    %v2128 = vtanh.pop %v2126
    %2131 = vrot.lane.b32.xlu0 %v2127, 64
    %v2132 = vpop.permute.xlu0 %2131
    %2133 = vrot.lane.b32.xlu0 %v2128, 64
    %v2134 = vpop.permute.xlu0 %2133
    %v2137 = vmul.f32 %v2100, %v2132
    %v2138 = vmul.f32 %v2102, %v2134
    %v2139 = vpack.c.bf16 %v2138, %v2137
    %v2141 = vunpack.c.l.b16 %v2139
    %v2142 = vunpack.c.h.b16 %v2139
    %v2143 = vpack.c.b16 %v2141, %v2141
    %v2144 = vpack.c.b16 %v2142, %v2142
    %2145 = vrot.lane.b32.xlu0 %v2143, 32
    %v2146 = vpop.permute.xlu0 %2145
    %2147 = vrot.lane.b32.xlu0 %v2144, 32
    %v2148 = vpop.permute.xlu0 %2147
    %s2151 = scalar_lea.vmem [#allocation7], 8
    %2152 = vst.msk [vmem:[%s2151] sm:$0xf] %vm1127, %v2146
    %2153 = vst.msk [vmem:[%s2151 + $0x4] sm:$0xf] %vm1127, %v2148
    %2156 = vrot.lane.b32.xlu0 %v2125, 96
    %v2157 = vpop.permute.xlu0 %2156
    %2158 = vrot.lane.b32.xlu0 %v2126, 96
    %v2159 = vpop.permute.xlu0 %2158
    %s2162 = scalar_lea.vmem [#allocation8], 16
    %2163 = vst.msk [vmem:[%s2162] sm:$0xff] %vm130, %v2157
    %2164 = vst.msk [vmem:[%s2162 + $0x8] sm:$0xff] %vm130, %v2159
    // Predicated region
    $region42: #{tpu_custom_call.1} parent=1 // pred_check
      _
    $region43: #{tpu_custom_call.1} parent=1 // pred_check_branch
      %2166 = sbr.rel (0) target = $region45
    $region44: #{tpu_custom_call.1} parent=1 // pred_region
      %s2168 = ssub.s32 256, 256
      %2169 = vsyncadd [#allocation6], %s2168
      %s2170 = sshll.u32 [#allocation7], 4
      %s2171 = int_to_ptr.vmem [resolvable:$true] %s2170
      %2176 = dma.vmem_to_hbm [thread:$0]  %s2171, 256, %s9, [#allocation6], 64, 64, 4
    $region45: #{tpu_custom_call.1} parent=1 // pred_fallthru
      _
    // Predicated region
    $region46: #{tpu_custom_call.1} parent=1 // pred_check
      _
    $region47: #{tpu_custom_call.1} parent=1 // pred_check_branch
      %2178 = sbr.rel (0) target = $region49
    $region48: #{tpu_custom_call.1} parent=1 // pred_region
      %s2180 = ssub.s32 512, 512
      %2181 = vsyncadd [#allocation9], %s2180
      %s2182 = sshll.u32 [#allocation8], 4
      %s2183 = int_to_ptr.vmem [resolvable:$true] %s2182
      %2188 = dma.vmem_to_hbm [thread:$0]  %s2183, 512, %s10, [#allocation9], 128, 128, 8
    $region49: #{tpu_custom_call.1} parent=1 // pred_fallthru
      _
    // Predicated region
    $region50: #{tpu_custom_call.1} parent=1 // pred_check
      _
    $region51: #{tpu_custom_call.1} parent=1 // pred_check_branch
      %2190 = sbr.rel (0) target = $region53
    $region52: #{tpu_custom_call.1} parent=1 // pred_region
      %2191 = dma.done [#allocation6], 256
    $region53: #{tpu_custom_call.1} parent=1 // pred_fallthru
      _
    // Predicated region
    $region54: #{tpu_custom_call.1} parent=1 // pred_check
      _
    $region55: #{tpu_custom_call.1} parent=1 // pred_check_branch
      %2193 = sbr.rel (0) target = $region57
    $region56: #{tpu_custom_call.1} parent=1 // pred_region
      %2194 = dma.done [#allocation9], 512
    $region57: #{tpu_custom_call.1} parent=1 // pred_fallthru
      _
    %2195 = vsyncpa [#allocation5], 1
    %2196 = vsyncpa [#allocation6], 1
    %2197 = vsyncpa [#allocation9], 1

</llo_original>
